<compile_context>
chip_gen: v7x
topology: tpu7x:2x2x1
jax: 0.10.0
libtpu: 0.0.40
codegen_flags: <defaults>
</compile_context>

<pallas_src>
import functools
import math

import jax
import jax.numpy as jnp
from jax import lax
from jax.experimental import pallas as pl
from jax.experimental.pallas import tpu as pltpu


def _sparse_conv2d_kernel(x_ref, w_ref, b_ref, o_ref, xpad_ref, *,
                          KH, KW, H, W, Ho, Wo, Cin, pad):
    """One batch element: o[cout, s] = sum_k w2d[cout, k] * im2col[k, s] + b[cout].

    x_ref   : (1, Cin, H, W)      unpadded input tile (input dtype)
    w_ref   : (Cout, KH*KW*Cin)   masked, pre-flattened weight (bf16)
    b_ref   : (Cout, 1)           bias (f32)
    o_ref   : (1, Cout, Ho*Wo)    output tile (lane-dense last dim)
    xpad_ref: (Cin, Hp, Wp)       VMEM scratch: zero-padded input in bf16
    """
    # --- fused zero-padding: zero the scratch border, copy (and cast) interior.
    if pad > 0:
        xpad_ref[...] = jnp.zeros_like(xpad_ref)
    xpad_ref[:, pad:pad + H, pad:pad + W] = x_ref[0].astype(xpad_ref.dtype)

    # --- im2col: tap (kh, kw) contributes Cin rows; K-order = (kh, kw, cin).
    taps = []
    for kh in range(KH):
        for kw in range(KW):
            taps.append(xpad_ref[:, kh:kh + Ho, kw:kw + Wo])      # (Cin, Ho, Wo)
    col = jnp.concatenate(taps, axis=0).reshape(KH * KW * Cin, Ho * Wo)

    # --- single MXU matmul (bf16 operands, f32 accumulate), bias folded in.
    acc = jnp.dot(w_ref[...], col,
                  preferred_element_type=jnp.float32)             # (Cout, Ho*Wo)
    acc = acc + b_ref[...]                                        # lane-broadcast bias
    o_ref[...] = acc[None].astype(o_ref.dtype)


def sparse_conv2d_forward(x_nchw, weight_oihw, mask_oihw, bias, *, padding=0):
    """Forward of SparseConv2D (stride=1, dilation=1, groups=1, norm_layer=None)."""
    N, Cin, H, W = x_nchw.shape
    Cout, Cin_w, KH, KW = weight_oihw.shape
    assert Cin == Cin_w, "groups != 1 not supported"
    Hp, Wp = H + 2 * padding, W + 2 * padding
    Ho, Wo = Hp - KH + 1, Wp - KW + 1
    K = KH * KW * Cin

    # Parameter glue (tiny, not the hot path): apply the sparsity mask, flatten
    # OIHW -> (Cout, KH*KW*Cin) with K ordered as (kh, kw, cin), cast to bf16.
    w2d = ((weight_oihw * mask_oihw)
           .transpose(0, 2, 3, 1)
           .reshape(Cout, K)
           .astype(jnp.bfloat16))
    b2 = bias.reshape(Cout, 1).astype(jnp.float32)

    kernel = functools.partial(
        _sparse_conv2d_kernel,
        KH=KH, KW=KW, H=H, W=W, Ho=Ho, Wo=Wo, Cin=Cin, pad=padding)

    out = pl.pallas_call(
        kernel,
        out_shape=jax.ShapeDtypeStruct((N, Cout, Ho * Wo), x_nchw.dtype),
        grid_spec=pltpu.PrefetchScalarGridSpec(
            num_scalar_prefetch=0,
            grid=(N,),
            in_specs=[
                pl.BlockSpec((1, Cin, H, W), lambda n: (n, 0, 0, 0)),
                pl.BlockSpec((Cout, K), lambda n: (0, 0)),
                pl.BlockSpec((Cout, 1), lambda n: (0, 0)),
            ],
            out_specs=pl.BlockSpec((1, Cout, Ho * Wo), lambda n: (n, 0, 0)),
            scratch_shapes=[
                pltpu.VMEM((Cin, Hp, Wp), jnp.bfloat16),
            ],
        ),
        compiler_params=pltpu.CompilerParams(
            dimension_semantics=("parallel",)),
    )(x_nchw, w2d, b2)

    # (N, Cout, Ho*Wo) -> (N, Cout, Ho, Wo): trailing-dim split, no data movement.
    return out.reshape(N, Cout, Ho, Wo)


if __name__ == "__main__":
    # Module config (SparseConv2D defaults: stride=1, dilation=1, groups=1,
    # bias=True, norm_type=None). Small shapes.
    batch, in_features, out_features = 2, 4, 8
    kernel_size, padding = 3, 1
    H = W = 16

    key = jax.random.PRNGKey(0)
    kx, kw = jax.random.split(key)

    # Deterministic parameter init mirroring __init__:
    #   gain = calculate_gain('relu', sqrt(5)) = sqrt(2)
    #   bound = gain / sqrt(in_features * prod(kernel_size))
    #   weight ~ Normal(0, bound); bias ~ Uniform(0, 0) = zeros;
    #   mask = (weight != 0)
    gain = math.sqrt(2.0)
    bound = gain / math.sqrt(in_features * kernel_size * kernel_size)
    weight = bound * jax.random.normal(
        kw, (out_features, in_features, kernel_size, kernel_size), dtype=jnp.float32
    )
    bias = jnp.zeros((out_features,), dtype=jnp.float32)
    mask = (weight != 0).astype(jnp.float32)

    x = jax.random.normal(kx, (batch, in_features, H, W), dtype=jnp.float32)

    y = sparse_conv2d_forward(x, weight, mask, bias, padding=padding)
    y = jax.block_until_ready(y)

    # Sanity check against XLA's conv (same semantics as F.conv2d).
    y_ref = lax.conv_general_dilated(
        x, weight * mask,
        window_strides=(1, 1),
        padding=((padding, padding), (padding, padding)),
        dimension_numbers=("NCHW", "OIHW", "NCHW"),
    ) + bias.reshape(1, -1, 1, 1)
    assert y.shape == (batch, out_features, H, W)
    # bf16 MXU operands -> relaxed tolerance vs the f32 XLA reference.
    assert jnp.allclose(y, y_ref, atol=5e-2, rtol=5e-2)

    # TODO(synk): optional BatchNorm2d branch (norm_type != None) not implemented;
    # default construction has norm_layer=None so forward semantics are complete.
    print("KERNEL_OK")
</pallas_src>

<mosaic_0001>
module attributes {stable_mosaic.version = 11 : i64} {
  func.func @_sparse_conv2d_kernel(%arg0: i32, %arg1: memref<1x4x16x16xf32, #tpu.memory_space<vmem>>, %arg2: memref<8x36xbf16, #tpu.memory_space<vmem>>, %arg3: memref<8x1xf32, #tpu.memory_space<vmem>>, %arg4: memref<1x8x256xf32, #tpu.memory_space<vmem>>, %arg5: memref<4x18x18xbf16, #tpu.memory_space<vmem>>) attributes {dimension_semantics = [#tpu.dimension_semantics<parallel>], iteration_bounds = array<i64: 2>, scalar_prefetch = 0 : i64, scratch_operands = 1 : i64, tpu.core_type = #tpu.core_type<tc>, window_params = [{transform_indices = @transform_0, window_bounds = array<i64: 1, 4, 16, 16>}, {pipeline_mode = #tpu.pipeline_mode<synchronous>, transform_indices = @transform_1, window_bounds = array<i64: 8, 36>}, {pipeline_mode = #tpu.pipeline_mode<synchronous>, transform_indices = @transform_2, window_bounds = array<i64: 8, 1>}, {transform_indices = @transform_3, window_bounds = array<i64: 1, 8, 256>}]} {
    %cst = arith.constant 0.000000e+00 : bf16
    %0 = vector.broadcast %cst : bf16 to vector<4x18x18xbf16>
    %c0 = arith.constant 0 : index
    %c0_0 = arith.constant 0 : index
    %c0_1 = arith.constant 0 : index
    %1 = vector.load %arg5[%c0, %c0_0, %c0_1] : memref<4x18x18xbf16, #tpu.memory_space<vmem>>, vector<4x18x18xbf16>
    tpu.vector_store %arg5[%c0, %c0_0, %c0_1], %0 {strides = array<i32>} : memref<4x18x18xbf16, #tpu.memory_space<vmem>>, vector<4x18x18xbf16>,
    %c0_2 = arith.constant 0 : index
    %c0_3 = arith.constant 0 : index
    %c0_4 = arith.constant 0 : index
    %c0_5 = arith.constant 0 : index
    %2 = vector.load %arg1[%c0_2, %c0_3, %c0_4, %c0_5] : memref<1x4x16x16xf32, #tpu.memory_space<vmem>>, vector<1x4x16x16xf32>
    %3 = vector.shape_cast %2 : vector<1x4x16x16xf32> to vector<4x16x16xf32>
    %4 = arith.truncf %3 : vector<4x16x16xf32> to vector<4x16x16xbf16>
    %c0_6 = arith.constant 0 : index
    %c1 = arith.constant 1 : index
    %c1_7 = arith.constant 1 : index
    %5 = vector.load %arg5[%c0_6, %c1, %c1_7] : memref<4x18x18xbf16, #tpu.memory_space<vmem>>, vector<4x16x16xbf16>
    tpu.vector_store %arg5[%c0_6, %c1, %c1_7], %4 {strides = array<i32>} : memref<4x18x18xbf16, #tpu.memory_space<vmem>>, vector<4x16x16xbf16>,
    %c0_8 = arith.constant 0 : index
    %c0_9 = arith.constant 0 : index
    %c0_10 = arith.constant 0 : index
    %6 = vector.load %arg5[%c0_8, %c0_9, %c0_10] : memref<4x18x18xbf16, #tpu.memory_space<vmem>>, vector<4x16x16xbf16>
    %c0_11 = arith.constant 0 : index
    %c0_12 = arith.constant 0 : index
    %c1_13 = arith.constant 1 : index
    %7 = vector.load %arg5[%c0_11, %c0_12, %c1_13] : memref<4x18x18xbf16, #tpu.memory_space<vmem>>, vector<4x16x16xbf16>
    %c0_14 = arith.constant 0 : index
    %c0_15 = arith.constant 0 : index
    %c2 = arith.constant 2 : index
    %8 = vector.load %arg5[%c0_14, %c0_15, %c2] : memref<4x18x18xbf16, #tpu.memory_space<vmem>>, vector<4x16x16xbf16>
    %c0_16 = arith.constant 0 : index
    %c1_17 = arith.constant 1 : index
    %c0_18 = arith.constant 0 : index
    %9 = vector.load %arg5[%c0_16, %c1_17, %c0_18] : memref<4x18x18xbf16, #tpu.memory_space<vmem>>, vector<4x16x16xbf16>
    %c0_19 = arith.constant 0 : index
    %c1_20 = arith.constant 1 : index
    %c1_21 = arith.constant 1 : index
    %10 = vector.load %arg5[%c0_19, %c1_20, %c1_21] : memref<4x18x18xbf16, #tpu.memory_space<vmem>>, vector<4x16x16xbf16>
    %c0_22 = arith.constant 0 : index
    %c1_23 = arith.constant 1 : index
    %c2_24 = arith.constant 2 : index
    %11 = vector.load %arg5[%c0_22, %c1_23, %c2_24] : memref<4x18x18xbf16, #tpu.memory_space<vmem>>, vector<4x16x16xbf16>
    %c0_25 = arith.constant 0 : index
    %c2_26 = arith.constant 2 : index
    %c0_27 = arith.constant 0 : index
    %12 = vector.load %arg5[%c0_25, %c2_26, %c0_27] : memref<4x18x18xbf16, #tpu.memory_space<vmem>>, vector<4x16x16xbf16>
    %c0_28 = arith.constant 0 : index
    %c2_29 = arith.constant 2 : index
    %c1_30 = arith.constant 1 : index
    %13 = vector.load %arg5[%c0_28, %c2_29, %c1_30] : memref<4x18x18xbf16, #tpu.memory_space<vmem>>, vector<4x16x16xbf16>
    %c0_31 = arith.constant 0 : index
    %c2_32 = arith.constant 2 : index
    %c2_33 = arith.constant 2 : index
    %14 = vector.load %arg5[%c0_31, %c2_32, %c2_33] : memref<4x18x18xbf16, #tpu.memory_space<vmem>>, vector<4x16x16xbf16>
    %15 = tpu.concatenate %6, %7, %8, %9, %10, %11, %12, %13, %14 in 0 : vector<4x16x16xbf16>, vector<4x16x16xbf16>, vector<4x16x16xbf16>, vector<4x16x16xbf16>, vector<4x16x16xbf16>, vector<4x16x16xbf16>, vector<4x16x16xbf16>, vector<4x16x16xbf16>, vector<4x16x16xbf16> -> vector<36x16x16xbf16>
    %16 = vector.shape_cast %15 : vector<36x16x16xbf16> to vector<36x256xbf16>
    %c0_34 = arith.constant 0 : index
    %c0_35 = arith.constant 0 : index
    %17 = vector.load %arg2[%c0_34, %c0_35] : memref<8x36xbf16, #tpu.memory_space<vmem>>, vector<8x36xbf16>
    %cst_36 = arith.constant dense<0.000000e+00> : vector<8x256xf32>
    %18 = tpu.matmul %17, %16, %cst_36 {dimension_numbers = #tpu.dot_dimension_numbers<[1], [0], [0], [1], [0, 0, 1, 1], [], []>} : vector<8x36xbf16>, vector<36x256xbf16>, vector<8x256xf32> -> vector<8x256xf32>
    %c0_37 = arith.constant 0 : index
    %c0_38 = arith.constant 0 : index
    %19 = vector.load %arg3[%c0_37, %c0_38] : memref<8x1xf32, #tpu.memory_space<vmem>>, vector<8x1xf32>
    %20 = vector.broadcast %19 : vector<8x1xf32> to vector<8x256xf32>
    %21 = arith.addf %18, %20 : vector<8x256xf32>
    %22 = vector.shape_cast %21 : vector<8x256xf32> to vector<1x8x256xf32>
    %c0_39 = arith.constant 0 : index
    %c0_40 = arith.constant 0 : index
    %c0_41 = arith.constant 0 : index
    %23 = vector.load %arg4[%c0_39, %c0_40, %c0_41] : memref<1x8x256xf32, #tpu.memory_space<vmem>>, vector<1x8x256xf32>
    tpu.vector_store %arg4[%c0_39, %c0_40, %c0_41], %22 {strides = array<i32>} : memref<1x8x256xf32, #tpu.memory_space<vmem>>, vector<1x8x256xf32>,
    return
  }
  func.func @transform_0(%arg0: i32) -> (i32, i32, i32, i32) {
    %c0_i32 = arith.constant 0 : i32
    %c0_i32_0 = arith.constant 0 : i32
    %c0_i32_1 = arith.constant 0 : i32
    %c0_i32_2 = arith.constant 0 : i32
    return %arg0, %c0_i32, %c0_i32_0, %c0_i32_1 : i32, i32, i32, i32
  }
  func.func @transform_1(%arg0: i32) -> (i32, i32) {
    %c0_i32 = arith.constant 0 : i32
    %c0_i32_0 = arith.constant 0 : i32
    %c0_i32_1 = arith.constant 0 : i32
    return %c0_i32, %c0_i32_0 : i32, i32
  }
  func.func @transform_2(%arg0: i32) -> (i32, i32) {
    %c0_i32 = arith.constant 0 : i32
    %c0_i32_0 = arith.constant 0 : i32
    %c0_i32_1 = arith.constant 0 : i32
    return %c0_i32, %c0_i32_0 : i32, i32
  }
  func.func @transform_3(%arg0: i32) -> (i32, i32, i32) {
    %c0_i32 = arith.constant 0 : i32
    %c0_i32_0 = arith.constant 0 : i32
    %c0_i32_1 = arith.constant 0 : i32
    return %arg0, %c0_i32, %c0_i32_0 : i32, i32, i32
  }
}

</mosaic_0001>

<llo_original>
// kernel: tpu_custom_call.1
$region0: #{tpu_custom_call.1}
  #allocation0 [shape = 'u32[]', space=smem, size = 0x4, offset = 0x4, fixed_abs, tag = 'smem constant byte address 0x4 - core index']
  #allocation1 [shape = 'u32[144,128]{1,0:T(1,128)}', space=vmem, size = 0x12000, scoped, tag = 'internal scratch']
  #allocation2 [shape = 'bf16[4,18,18]{2,1,0:T(8,128)(2,1)}', space=vmem, size = 0x6000, scoped, tag = 'scratch operand']
  %s0 = inlined_call_operand.hbm [shape: f32[2,4,16,16], index: 0, kind: input, shape index: {}]
  %s1 = inlined_call_operand.vmem [shape: bf16[8,36], index: 1, kind: input, shape index: {}]
  %s2 = inlined_call_operand.vmem [shape: f32[8,1], index: 2, kind: input, shape index: {}]
  %s3 = inlined_call_operand.hbm [shape: f32[2,8,256], index: 3, kind: output, shape index: {}]
  %s4 = sld [smem:[#allocation0]]
  $region49: #{tpu_custom_call.1} parent=0
    _
  %s6 = ssub.s32 1, %s4
  %s7 = scalar_select 0, %s6, %s4
  $region1: #{tpu_custom_call.1} parent=0
    #allocation3 [shape = 'u8[65536]{0}', space=vmem, size = 0x10000, scoped, tag = 'input window, operand 0']
    #allocation4 [shape = 's32[2]{0}', space=sflag, size = 0x8, scoped, tag = 'scoped memory for tpu_custom_call.1']
    #allocation5 [shape = 's32[2]{0}', space=sflag, size = 0x8, scoped, tag = 'scoped memory for tpu_custom_call.1']
    #allocation6 [shape = 'u8[16384]{0}', space=vmem, size = 0x4000, scoped, tag = 'output window, operand 0']
    %8 = vsyncpa [#allocation4], 0
    %s9 = scalar_lea.sflag [#allocation4], 1
    %10 = vsyncpa %s9, 0
    %11 = vsyncpa [#allocation5], 0
    %s12 = scalar_lea.sflag [#allocation5], 1
    %13 = vsyncpa %s12, 0
    loop: start=0, step=1, limit=4
    $region2: #{tpu_custom_call.1} parent=1 // loop_pre_header
      _
    $region3: #{tpu_custom_call.1} parent=1 // loop_header
      %s15 = sphi 0, %s19
      %p16 = scmp.ge.s32.totalorder %s15, 4
      %s25 = sphi 0, %s27
      %s28 = sphi 0, %s25
      %s29 = sphi 0, %s28
      %s45 = sphi 0, %s29
      %s49 = sphi 0, %s49
      %s51 = sphi 0, %s49
      %s52 = sphi 0, %s51
      %s66 = sphi 0, %s52
      %s70 = sphi 0, %s70
      %s72 = sphi 0, %s70
      %s73 = sphi 0, %s72
      %s87 = sphi 0, %s73
      %s93 = sphi 0, %s95
      %s96 = sphi 0, %s93
      %s97 = sphi 0, %s96
      %s113 = sphi 0, %s97
    $region4: #{tpu_custom_call.1} parent=1 // loop_header_branch
      %18 = sbr.rel (%p16) target = $region8
    $region5: #{tpu_custom_call.1} parent=1 // loop_body
      %s20 = ssub.s32 %s15, 1
      %s21 = ssub.s32 %s15, 2
      %s22 = sadd.s32 %s15, 1
      %s23 = ssub.s32 %s15, %s22
      %p24 = scmp.eq.s32.totalorder %s23, 0
      %s26 = sadd.s32 %s25, 1
      %s27 = scalar_select %p24, %s25, %s26
      %p30 = pneg %p24
      %p31 = scmp.eq.s32.totalorder %s15, 1
      %p32 = por %p30, %p31
      %p33 = scmp.ne.s32.totalorder %s25, %s28
      %p34 = scmp.eq.s32.totalorder %s15, 0
      %p35 = por %p33, %p34
      %p36 = scmp.ne.s32.totalorder %s25, %s28
      %p37 = scmp.eq.s32.totalorder %s20, 1
      %p38 = por %p36, %p37
      %p39 = scmp.ne.s32.totalorder %s28, %s29
      %p40 = scmp.eq.s32.totalorder %s20, 0
      %p41 = por %p39, %p40
      %p42 = scmp.ne.s32.totalorder %s28, %s29
      %p43 = scmp.eq.s32.totalorder %s21, 1
      %p44 = por %p42, %p43
      %p46 = scmp.ne.s32.totalorder %s29, %s45
      %p47 = scmp.eq.s32.totalorder %s21, 0
      %p48 = por %p46, %p47
      %s50 = sadd.s32 %s49, 1
      %p53 = scmp.eq.s32.totalorder %s15, 1
      %p54 = scmp.ne.s32.totalorder %s49, %s51
      %p55 = scmp.eq.s32.totalorder %s15, 0
      %p56 = por %p54, %p55
      %p57 = scmp.ne.s32.totalorder %s49, %s51
      %p58 = scmp.eq.s32.totalorder %s20, 1
      %p59 = por %p57, %p58
      %p60 = scmp.ne.s32.totalorder %s51, %s52
      %p61 = scmp.eq.s32.totalorder %s20, 0
      %p62 = por %p60, %p61
      %p63 = scmp.ne.s32.totalorder %s51, %s52
      %p64 = scmp.eq.s32.totalorder %s21, 1
      %p65 = por %p63, %p64
      %p67 = scmp.ne.s32.totalorder %s52, %s66
      %p68 = scmp.eq.s32.totalorder %s21, 0
      %p69 = por %p67, %p68
      %s71 = sadd.s32 %s70, 1
      %p74 = scmp.eq.s32.totalorder %s15, 1
      %p75 = scmp.ne.s32.totalorder %s70, %s72
      %p76 = scmp.eq.s32.totalorder %s15, 0
      %p77 = por %p75, %p76
      %p78 = scmp.ne.s32.totalorder %s70, %s72
      %p79 = scmp.eq.s32.totalorder %s20, 1
      %p80 = por %p78, %p79
      %p81 = scmp.ne.s32.totalorder %s72, %s73
      %p82 = scmp.eq.s32.totalorder %s20, 0
      %p83 = por %p81, %p82
      %p84 = scmp.ne.s32.totalorder %s72, %s73
      %p85 = scmp.eq.s32.totalorder %s21, 1
      %p86 = por %p84, %p85
      %p88 = scmp.ne.s32.totalorder %s73, %s87
      %p89 = scmp.eq.s32.totalorder %s21, 0
      %p90 = por %p88, %p89
      %s91 = ssub.s32 %s15, %s22
      %p92 = scmp.eq.s32.totalorder %s91, 0
      %s94 = sadd.s32 %s93, 1
      %s95 = scalar_select %p92, %s93, %s94
      %p98 = pneg %p92
      %p99 = scmp.eq.s32.totalorder %s15, 1
      %p100 = por %p98, %p99
      %p101 = scmp.ne.s32.totalorder %s93, %s96
      %p102 = scmp.eq.s32.totalorder %s15, 0
      %p103 = por %p101, %p102
      %p104 = scmp.ne.s32.totalorder %s93, %s96
      %p105 = scmp.eq.s32.totalorder %s20, 1
      %p106 = por %p104, %p105
      %p107 = scmp.ne.s32.totalorder %s96, %s97
      %p108 = scmp.eq.s32.totalorder %s20, 0
      %p109 = por %p107, %p108
      %p110 = scmp.ne.s32.totalorder %s96, %s97
      %p111 = scmp.eq.s32.totalorder %s21, 1
      %p112 = por %p110, %p111
      %p114 = scmp.ne.s32.totalorder %s97, %s113
      %p115 = scmp.eq.s32.totalorder %s21, 0
      %p116 = por %p114, %p115
      %p117 = scmp.le.s32.totalorder 1, %s15
      %p118 = scmp.lt.s32.totalorder %s15, 3
      %p119 = pnand %p117, %p118
      %p120 = pneg %p119
      // Predicated region
      $region9: #{tpu_custom_call.1} parent=5 // pred_check
        _
      $region10: #{tpu_custom_call.1} parent=5 // pred_check_branch
        %122 = sbr.rel (%p119) target = $region12
      $region11: #{tpu_custom_call.1} parent=5 // pred_region
        %s123 = ssub.s32 %s15, 1
        // Predicated region
        $region13: #{tpu_custom_call.1} parent=11 // pred_check
          %p124 = pneg %p62
        $region14: #{tpu_custom_call.1} parent=11 // pred_check_branch
          %126 = sbr.rel (%p124) target = $region16
        $region15: #{tpu_custom_call.1} parent=11 // pred_region
          _
        $region16: #{tpu_custom_call.1} parent=11 // pred_fallthru
          _
        // Predicated region
        $region17: #{tpu_custom_call.1} parent=11 // pred_check
          %p127 = pneg %p83
        $region18: #{tpu_custom_call.1} parent=11 // pred_check_branch
          %129 = sbr.rel (%p127) target = $region20
        $region19: #{tpu_custom_call.1} parent=11 // pred_region
          _
        $region20: #{tpu_custom_call.1} parent=11 // pred_fallthru
          _
      $region12: #{tpu_custom_call.1} parent=5 // pred_fallthru
        _
      %p130 = scmp.lt.s32.totalorder %s15, 2
      // Predicated region
      $region21: #{tpu_custom_call.1} parent=5 // pred_check
        %p131 = pneg %p130
      $region22: #{tpu_custom_call.1} parent=5 // pred_check_branch
        %133 = sbr.rel (%p131) target = $region24
      $region23: #{tpu_custom_call.1} parent=5 // pred_region
        // Predicated region
        $region25: #{tpu_custom_call.1} parent=23 // pred_check
          %p134 = pneg %p35
        $region26: #{tpu_custom_call.1} parent=23 // pred_check_branch
          %136 = sbr.rel (%p134) target = $region28
        $region27: #{tpu_custom_call.1} parent=23 // pred_region
          %s137 = sand.u32 %s25, 1
          %s138 = scalar_lea.sflag [#allocation4], %s137
          %s139 = sand.u32 %s25, 1
          %s140 = smul.addr %s139, 64
          %s141 = scalar_lea.vmem [#allocation3], %s140
          %s143 = ssub.s32 1024, 1024
          %144 = vsyncadd %s138, %s143
          %s145 = smul.addr %s15, 8
          %s146 = smul.addr %s145, 128
          %s147 = scalar_lea.hbm %s0, %s146
          %s148 = sshll.u32 %s141, 4
          %s149 = int_to_ptr.vmem [resolvable:$true] %s148
          %154 = dma.hbm_to_vmem [thread:$0]  %s147, 1024, %s149, %s138, 128, 128, 8
        $region28: #{tpu_custom_call.1} parent=23 // pred_fallthru
          _
      $region24: #{tpu_custom_call.1} parent=5 // pred_fallthru
        _
      %p155 = scmp.le.s32.totalorder 1, %s15
      %p156 = scmp.lt.s32.totalorder %s15, 3
      %p157 = pnand %p155, %p156
      %p158 = pneg %p157
      // Predicated region
      $region29: #{tpu_custom_call.1} parent=5 // pred_check
        _
      $region30: #{tpu_custom_call.1} parent=5 // pred_check_branch
        %160 = sbr.rel (%p157) target = $region32
      $region31: #{tpu_custom_call.1} parent=5 // pred_region
        %s161 = ssub.s32 %s15, 1
        %s162 = sand.u32 %s28, 1
        %s163 = scalar_lea.sflag [#allocation4], %s162
        %s164 = sand.u32 %s28, 1
        %s165 = smul.addr %s164, 64
        %s166 = scalar_lea.vmem [#allocation3], %s165
        // Predicated region
        $region33: #{tpu_custom_call.1} parent=31 // pred_check
          %p167 = pneg %p41
        $region34: #{tpu_custom_call.1} parent=31 // pred_check_branch
          %169 = sbr.rel (%p167) target = $region36
        $region35: #{tpu_custom_call.1} parent=31 // pred_region
          %170 = dma.done %s163, 1024
        $region36: #{tpu_custom_call.1} parent=31 // pred_fallthru
          _
        %s171 = sand.u32 %s28, 1
        %s172 = scalar_lea.sflag [#allocation4], %s171
        %s173 = sand.u32 %s28, 1
        %s174 = smul.addr %s173, 64
        %s175 = scalar_lea.vmem [#allocation3], %s174
        %p176 = pneg %p41
        %p177 = pneg %p38
        %p178 = pneg %p62
        %p179 = pneg %p59
        %p180 = pneg %p83
        %p181 = pneg %p80
        %p182 = pneg %p109
        %p183 = pneg %p106
        %s184 = sand.u32 %s96, 1
        %s185 = scalar_lea.sflag [#allocation5], %s184
        %s186 = sand.u32 %s96, 1
        %s187 = smul.addr %s186, 16
        %s188 = scalar_lea.vmem [#allocation6], %s187
        %vm190 = vcmask 142336
        %191 = vst.msk [vmem:[#allocation2] sm:$0xf] %vm190, 0
        %192 = vst.msk [vmem:[#allocation2 + $0x4] sm:$0xf] %vm190, 0
        %vm193 = vcmask 139264
        %194 = vst.msk [vmem:[#allocation2 + $0x8] sm:$0x1] %vm193, 0
        %195 = vst.msk [vmem:[#allocation2 + $0xc] sm:$0xf] %vm190, 0
        %196 = vst.msk [vmem:[#allocation2 + $0x10] sm:$0xf] %vm190, 0
        %197 = vst.msk [vmem:[#allocation2 + $0x14] sm:$0x1] %vm193, 0
        %198 = vst.msk [vmem:[#allocation2 + $0x18] sm:$0xf] %vm190, 0
        %199 = vst.msk [vmem:[#allocation2 + $0x1c] sm:$0xf] %vm190, 0
        %200 = vst.msk [vmem:[#allocation2 + $0x20] sm:$0x1] %vm193, 0
        %201 = vst.msk [vmem:[#allocation2 + $0x24] sm:$0xf] %vm190, 0
        %202 = vst.msk [vmem:[#allocation2 + $0x28] sm:$0xf] %vm190, 0
        %203 = vst.msk [vmem:[#allocation2 + $0x2c] sm:$0x1] %vm193, 0
        %v204 = vld [vmem:[%s166] sm:$0xff]
        %v205 = vld [vmem:[%s166 + $0x8] sm:$0xff]
        %v206 = vld [vmem:[%s166 + $0x10] sm:$0xff]
        %v207 = vld [vmem:[%s166 + $0x18] sm:$0xff]
        %v208 = vld [vmem:[%s166 + $0x20] sm:$0xff]
        %v209 = vld [vmem:[%s166 + $0x28] sm:$0xff]
        %v210 = vld [vmem:[%s166 + $0x30] sm:$0xff]
        %v211 = vld [vmem:[%s166 + $0x38] sm:$0xff]
        %v212 = vpack.c.bf16 %v205, %v204
        %v213 = vpack.c.bf16 %v207, %v206
        %v214 = vpack.c.bf16 %v209, %v208
        %v215 = vpack.c.bf16 %v211, %v210
        %v220 = vunpack.c.l.b16 %v212
        %v221 = vunpack.c.h.b16 %v212
        %v222 = vunpack.c.l.b16 %v213
        %v223 = vunpack.c.h.b16 %v213
        %v224 = vunpack.c.l.b16 %v214
        %v225 = vunpack.c.h.b16 %v214
        %v226 = vunpack.c.l.b16 %v215
        %v227 = vunpack.c.h.b16 %v215
        %v228 = vpack.c.b16 %v220, %v220
        %v229 = vpack.c.b16 %v221, %v221
        %v230 = vpack.c.b16 %v222, %v222
        %v231 = vpack.c.b16 %v223, %v223
        %v232 = vpack.c.b16 %v224, %v224
        %v233 = vpack.c.b16 %v225, %v225
        %v234 = vpack.c.b16 %v226, %v226
        %v235 = vpack.c.b16 %v227, %v227
        %vm236 = vsmask.f32 256
        %vm237 = vsmask.f32 4368
        %vm238 = vmor %vm236, %vm237
        %v240 = vshrl.u32 %v228, 16
        %v242 = vrot.slane %v240, 7
        %v243 = vshll.u32 %v228, 16
        %v245 = vor.u32 %v242, %v243
        %v246 = vrot.slane %v242, 4
        %v248 = vshrl.u32 %v229, 16
        %v250 = vrot.slane %v248, 7
        %v251 = vshll.u32 %v229, 16
        %v253 = vor.u32 %v250, %v251
        %v254 = vsel %vm238, %v246, %v253
        %v255 = vrot.slane %v250, 4
        %v257 = vshrl.u32 %v230, 16
        %v259 = vrot.slane %v257, 7
        %v260 = vshll.u32 %v230, 16
        %v262 = vor.u32 %v259, %v260
        %v263 = vrot.slane %v259, 4
        %v265 = vshrl.u32 %v231, 16
        %v267 = vrot.slane %v265, 7
        %v268 = vshll.u32 %v231, 16
        %v270 = vor.u32 %v267, %v268
        %v271 = vsel %vm238, %v263, %v270
        %v272 = vrot.slane %v267, 4
        %v274 = vshrl.u32 %v232, 16
        %v276 = vrot.slane %v274, 7
        %v277 = vshll.u32 %v232, 16
        %v279 = vor.u32 %v276, %v277
        %v280 = vrot.slane %v276, 4
        %v282 = vshrl.u32 %v233, 16
        %v284 = vrot.slane %v282, 7
        %v285 = vshll.u32 %v233, 16
        %v287 = vor.u32 %v284, %v285
        %v288 = vsel %vm238, %v280, %v287
        %v289 = vrot.slane %v284, 4
        %v291 = vshrl.u32 %v234, 16
        %v293 = vrot.slane %v291, 7
        %v294 = vshll.u32 %v234, 16
        %v296 = vor.u32 %v293, %v294
        %v297 = vrot.slane %v293, 4
        %v299 = vshrl.u32 %v235, 16
        %v301 = vrot.slane %v299, 7
        %v302 = vshll.u32 %v235, 16
        %v304 = vor.u32 %v301, %v302
        %v305 = vsel %vm238, %v297, %v304
        %v306 = vrot.slane %v301, 4
        %307 = vrot.lane.b32.xlu0 %v245, 1
        %v308 = vpop.permute.xlu0 %307
        %309 = vrot.lane.b32.xlu0 %v254, 1
        %v310 = vpop.permute.xlu0 %309
        %311 = vrot.lane.b32.xlu0 %v255, 1
        %v312 = vpop.permute.xlu0 %311
        %313 = vrot.lane.b32.xlu0 %v262, 1
        %v314 = vpop.permute.xlu0 %313
        %315 = vrot.lane.b32.xlu0 %v271, 1
        %v316 = vpop.permute.xlu0 %315
        %317 = vrot.lane.b32.xlu0 %v272, 1
        %v318 = vpop.permute.xlu0 %317
        %319 = vrot.lane.b32.xlu0 %v279, 1
        %v320 = vpop.permute.xlu0 %319
        %321 = vrot.lane.b32.xlu0 %v288, 1
        %v322 = vpop.permute.xlu0 %321
        %323 = vrot.lane.b32.xlu0 %v289, 1
        %v324 = vpop.permute.xlu0 %323
        %325 = vrot.lane.b32.xlu0 %v296, 1
        %v326 = vpop.permute.xlu0 %325
        %327 = vrot.lane.b32.xlu0 %v305, 1
        %v328 = vpop.permute.xlu0 %327
        %329 = vrot.lane.b32.xlu0 %v306, 1
        %v330 = vpop.permute.xlu0 %329
        %vm343 = vcmask 134152
        %vm344 = vsmask.f32 7938
        %vm345 = vmand %vm343, %vm344
        %v346 = vld [vmem:[#allocation2] sm:$0xf]
        %v347 = vsel %vm345, %v308, %v346
        %348 = vst [vmem:[#allocation2] sm:$0xf] %v347
        %vm349 = vcmask 134152
        %350 = vst.msk [vmem:[#allocation2 + $0x4] sm:$0xf] %vm349, %v310
        %vm351 = vcmask 131080
        %vm352 = vmand %vm351, %vm236
        %v353 = vld [vmem:[#allocation2 + $0x8] sm:$0x1]
        %v354 = vsel %vm352, %v312, %v353
        %355 = vst [vmem:[#allocation2 + $0x8] sm:$0x1] %v354
        %v356 = vld [vmem:[#allocation2 + $0xc] sm:$0xf]
        %v357 = vsel %vm345, %v314, %v356
        %358 = vst [vmem:[#allocation2 + $0xc] sm:$0xf] %v357
        %359 = vst.msk [vmem:[#allocation2 + $0x10] sm:$0xf] %vm349, %v316
        %v360 = vld [vmem:[#allocation2 + $0x14] sm:$0x1]
        %v361 = vsel %vm352, %v318, %v360
        %362 = vst [vmem:[#allocation2 + $0x14] sm:$0x1] %v361
        %v363 = vld [vmem:[#allocation2 + $0x18] sm:$0xf]
        %v364 = vsel %vm345, %v320, %v363
        %365 = vst [vmem:[#allocation2 + $0x18] sm:$0xf] %v364
        %366 = vst.msk [vmem:[#allocation2 + $0x1c] sm:$0xf] %vm349, %v322
        %v367 = vld [vmem:[#allocation2 + $0x20] sm:$0x1]
        %v368 = vsel %vm352, %v324, %v367
        %369 = vst [vmem:[#allocation2 + $0x20] sm:$0x1] %v368
        %v370 = vld [vmem:[#allocation2 + $0x24] sm:$0xf]
        %v371 = vsel %vm345, %v326, %v370
        %372 = vst [vmem:[#allocation2 + $0x24] sm:$0xf] %v371
        %373 = vst.msk [vmem:[#allocation2 + $0x28] sm:$0xf] %vm349, %v328
        %v374 = vld [vmem:[#allocation2 + $0x2c] sm:$0x1]
        %v375 = vsel %vm352, %v330, %v374
        %376 = vst [vmem:[#allocation2 + $0x2c] sm:$0x1] %v375
        %v377 = vld [vmem:[#allocation2] sm:$0xf]
        %v378 = vld [vmem:[#allocation2 + $0x4] sm:$0xf]
        %v379 = vld [vmem:[#allocation2 + $0xc] sm:$0xf]
        %v380 = vld [vmem:[#allocation2 + $0x10] sm:$0xf]
        %v381 = vld [vmem:[#allocation2 + $0x18] sm:$0xf]
        %v382 = vld [vmem:[#allocation2 + $0x1c] sm:$0xf]
        %v383 = vld [vmem:[#allocation2 + $0x24] sm:$0xf]
        %v384 = vld [vmem:[#allocation2 + $0x28] sm:$0xf]
        %v385 = vld [vmem:[#allocation2 + $0x8] sm:$0x1]
        %v386 = vld [vmem:[#allocation2 + $0x14] sm:$0x1]
        %v387 = vld [vmem:[#allocation2 + $0x20] sm:$0x1]
        %v388 = vld [vmem:[#allocation2 + $0x2c] sm:$0x1]
        %v389 = vld [vmem:[#allocation2] sm:$0xe]
        %v390 = vld [vmem:[#allocation2 + $0xc] sm:$0xe]
        %v391 = vld [vmem:[#allocation2 + $0x18] sm:$0xe]
        %v392 = vld [vmem:[#allocation2 + $0x24] sm:$0xe]
        %401 = vrot.lane.b32.xlu0 %v377, 127
        %v402 = vpop.permute.xlu0 %401
        %403 = vrot.lane.b32.xlu0 %v378, 127
        %v404 = vpop.permute.xlu0 %403
        %405 = vrot.lane.b32.xlu0 %v379, 127
        %v406 = vpop.permute.xlu0 %405
        %407 = vrot.lane.b32.xlu0 %v380, 127
        %v408 = vpop.permute.xlu0 %407
        %409 = vrot.lane.b32.xlu0 %v381, 127
        %v410 = vpop.permute.xlu0 %409
        %411 = vrot.lane.b32.xlu0 %v382, 127
        %v412 = vpop.permute.xlu0 %411
        %413 = vrot.lane.b32.xlu0 %v383, 127
        %v414 = vpop.permute.xlu0 %413
        %415 = vrot.lane.b32.xlu0 %v384, 127
        %v416 = vpop.permute.xlu0 %415
        %417 = vrot.lane.b32.xlu0 %v377, 126
        %v418 = vpop.permute.xlu0 %417
        %419 = vrot.lane.b32.xlu0 %v378, 126
        %v420 = vpop.permute.xlu0 %419
        %421 = vrot.lane.b32.xlu0 %v379, 126
        %v422 = vpop.permute.xlu0 %421
        %423 = vrot.lane.b32.xlu0 %v380, 126
        %v424 = vpop.permute.xlu0 %423
        %425 = vrot.lane.b32.xlu0 %v381, 126
        %v426 = vpop.permute.xlu0 %425
        %427 = vrot.lane.b32.xlu0 %v382, 126
        %v428 = vpop.permute.xlu0 %427
        %429 = vrot.lane.b32.xlu0 %v383, 126
        %v430 = vpop.permute.xlu0 %429
        %431 = vrot.lane.b32.xlu0 %v384, 126
        %v432 = vpop.permute.xlu0 %431
        %vm433 = vsmask.f32 3328
        %vm434 = vsmask.f32 7440
        %vm435 = vmor %vm433, %vm434
        %v437 = vshrl.u32 %v377, 16
        %v439 = vrot.slane %v437, 4
        %v440 = vshll.u32 %v377, 16
        %v442 = vrot.slane %v440, 5
        %v443 = vor.u32 %v439, %v442
        %v444 = vrot.slane %v443, 4
        %v446 = vshll.u32 %v378, 16
        %v448 = vrot.slane %v446, 5
        %v449 = vsel %vm435, %v444, %v448
        %v450 = vshrl.u32 %v378, 16
        %v452 = vrot.slane %v450, 4
        %v453 = vor.u32 %v452, %v448
        %v454 = vrot.slane %v453, 4
        %v456 = vshll.u32 %v385, 16
        %v458 = vrot.slane %v456, 5
        %v459 = vsel %vm435, %v454, %v458
        %v461 = vshrl.u32 %v379, 16
        %v463 = vrot.slane %v461, 4
        %v464 = vshll.u32 %v379, 16
        %v466 = vrot.slane %v464, 5
        %v467 = vor.u32 %v463, %v466
        %v468 = vrot.slane %v467, 4
        %v470 = vshll.u32 %v380, 16
        %v472 = vrot.slane %v470, 5
        %v473 = vsel %vm435, %v468, %v472
        %v474 = vshrl.u32 %v380, 16
        %v476 = vrot.slane %v474, 4
        %v477 = vor.u32 %v476, %v472
        %v478 = vrot.slane %v477, 4
        %v480 = vshll.u32 %v386, 16
        %v482 = vrot.slane %v480, 5
        %v483 = vsel %vm435, %v478, %v482
        %v485 = vshrl.u32 %v381, 16
        %v487 = vrot.slane %v485, 4
        %v488 = vshll.u32 %v381, 16
        %v490 = vrot.slane %v488, 5
        %v491 = vor.u32 %v487, %v490
        %v492 = vrot.slane %v491, 4
        %v494 = vshll.u32 %v382, 16
        %v496 = vrot.slane %v494, 5
        %v497 = vsel %vm435, %v492, %v496
        %v498 = vshrl.u32 %v382, 16
        %v500 = vrot.slane %v498, 4
        %v501 = vor.u32 %v500, %v496
        %v502 = vrot.slane %v501, 4
        %v504 = vshll.u32 %v387, 16
        %v506 = vrot.slane %v504, 5
        %v507 = vsel %vm435, %v502, %v506
        %v509 = vshrl.u32 %v383, 16
        %v511 = vrot.slane %v509, 4
        %v512 = vshll.u32 %v383, 16
        %v514 = vrot.slane %v512, 5
        %v515 = vor.u32 %v511, %v514
        %v516 = vrot.slane %v515, 4
        %v518 = vshll.u32 %v384, 16
        %v520 = vrot.slane %v518, 5
        %v521 = vsel %vm435, %v516, %v520
        %v522 = vshrl.u32 %v384, 16
        %v524 = vrot.slane %v522, 4
        %v525 = vor.u32 %v524, %v520
        %v526 = vrot.slane %v525, 4
        %v528 = vshll.u32 %v388, 16
        %v530 = vrot.slane %v528, 5
        %v531 = vsel %vm435, %v526, %v530
        %532 = vrot.lane.b32.xlu0 %v449, 127
        %v533 = vpop.permute.xlu0 %532
        %534 = vrot.lane.b32.xlu0 %v459, 127
        %v535 = vpop.permute.xlu0 %534
        %536 = vrot.lane.b32.xlu0 %v473, 127
        %v537 = vpop.permute.xlu0 %536
        %538 = vrot.lane.b32.xlu0 %v483, 127
        %v539 = vpop.permute.xlu0 %538
        %540 = vrot.lane.b32.xlu0 %v497, 127
        %v541 = vpop.permute.xlu0 %540
        %542 = vrot.lane.b32.xlu0 %v507, 127
        %v543 = vpop.permute.xlu0 %542
        %544 = vrot.lane.b32.xlu0 %v521, 127
        %v545 = vpop.permute.xlu0 %544
        %546 = vrot.lane.b32.xlu0 %v531, 127
        %v547 = vpop.permute.xlu0 %546
        %548 = vrot.lane.b32.xlu0 %v449, 126
        %v549 = vpop.permute.xlu0 %548
        %550 = vrot.lane.b32.xlu0 %v459, 126
        %v551 = vpop.permute.xlu0 %550
        %552 = vrot.lane.b32.xlu0 %v473, 126
        %v553 = vpop.permute.xlu0 %552
        %554 = vrot.lane.b32.xlu0 %v483, 126
        %v555 = vpop.permute.xlu0 %554
        %556 = vrot.lane.b32.xlu0 %v497, 126
        %v557 = vpop.permute.xlu0 %556
        %558 = vrot.lane.b32.xlu0 %v507, 126
        %v559 = vpop.permute.xlu0 %558
        %560 = vrot.lane.b32.xlu0 %v521, 126
        %v561 = vpop.permute.xlu0 %560
        %562 = vrot.lane.b32.xlu0 %v531, 126
        %v563 = vpop.permute.xlu0 %562
        %vm572 = vcmask 1042432
        %vm573 = vcmask 1046532
        %vm574 = vmor %vm572, %vm573
        %v575 = vrot.slane %v389, 5
        %v576 = vrot.slane %v575, 4
        %v577 = vrot.slane %v378, 5
        %v578 = vsel %vm574, %v576, %v577
        %v579 = vrot.slane %v577, 4
        %v580 = vrot.slane %v385, 5
        %v581 = vsel %vm574, %v579, %v580
        %v582 = vrot.slane %v390, 5
        %v583 = vrot.slane %v582, 4
        %v584 = vrot.slane %v380, 5
        %v585 = vsel %vm574, %v583, %v584
        %v586 = vrot.slane %v584, 4
        %v587 = vrot.slane %v386, 5
        %v588 = vsel %vm574, %v586, %v587
        %v589 = vrot.slane %v391, 5
        %v590 = vrot.slane %v589, 4
        %v591 = vrot.slane %v382, 5
        %v592 = vsel %vm574, %v590, %v591
        %v593 = vrot.slane %v591, 4
        %v594 = vrot.slane %v387, 5
        %v595 = vsel %vm574, %v593, %v594
        %v596 = vrot.slane %v392, 5
        %v597 = vrot.slane %v596, 4
        %v598 = vrot.slane %v384, 5
        %v599 = vsel %vm574, %v597, %v598
        %v600 = vrot.slane %v598, 4
        %v601 = vrot.slane %v388, 5
        %v602 = vsel %vm574, %v600, %v601
        %603 = vrot.lane.b32.xlu0 %v578, 127
        %v604 = vpop.permute.xlu0 %603
        %605 = vrot.lane.b32.xlu0 %v581, 127
        %v606 = vpop.permute.xlu0 %605
        %607 = vrot.lane.b32.xlu0 %v585, 127
        %v608 = vpop.permute.xlu0 %607
        %609 = vrot.lane.b32.xlu0 %v588, 127
        %v610 = vpop.permute.xlu0 %609
        %611 = vrot.lane.b32.xlu0 %v592, 127
        %v612 = vpop.permute.xlu0 %611
        %613 = vrot.lane.b32.xlu0 %v595, 127
        %v614 = vpop.permute.xlu0 %613
        %615 = vrot.lane.b32.xlu0 %v599, 127
        %v616 = vpop.permute.xlu0 %615
        %617 = vrot.lane.b32.xlu0 %v602, 127
        %v618 = vpop.permute.xlu0 %617
        %619 = vrot.lane.b32.xlu0 %v578, 126
        %v620 = vpop.permute.xlu0 %619
        %621 = vrot.lane.b32.xlu0 %v581, 126
        %v622 = vpop.permute.xlu0 %621
        %623 = vrot.lane.b32.xlu0 %v585, 126
        %v624 = vpop.permute.xlu0 %623
        %625 = vrot.lane.b32.xlu0 %v588, 126
        %v626 = vpop.permute.xlu0 %625
        %627 = vrot.lane.b32.xlu0 %v592, 126
        %v628 = vpop.permute.xlu0 %627
        %629 = vrot.lane.b32.xlu0 %v595, 126
        %v630 = vpop.permute.xlu0 %629
        %631 = vrot.lane.b32.xlu0 %v599, 126
        %v632 = vpop.permute.xlu0 %631
        %633 = vrot.lane.b32.xlu0 %v602, 126
        %v634 = vpop.permute.xlu0 %633
        %v635 = vpack.i.b16 %v379, %v377
        %v637 = vpack.i.b16 %v461, %v437
        %v639 = vpack.i.b16 %v383, %v381
        %v641 = vpack.i.b16 %v509, %v485
        %v645 = vpack.i.b16 %v406, %v402
        %v647 = vshrl.u32 %v402, 16
        %v648 = vshrl.u32 %v406, 16
        %v649 = vpack.i.b16 %v648, %v647
        %v653 = vpack.i.b16 %v414, %v410
        %v655 = vshrl.u32 %v410, 16
        %v656 = vshrl.u32 %v414, 16
        %v657 = vpack.i.b16 %v656, %v655
        %v661 = vpack.i.b16 %v422, %v418
        %v663 = vshrl.u32 %v418, 16
        %v664 = vshrl.u32 %v422, 16
        %v665 = vpack.i.b16 %v664, %v663
        %v669 = vpack.i.b16 %v430, %v426
        %v671 = vshrl.u32 %v426, 16
        %v672 = vshrl.u32 %v430, 16
        %v673 = vpack.i.b16 %v672, %v671
        %v677 = vpack.i.b16 %v473, %v449
        %v679 = vshrl.u32 %v449, 16
        %v680 = vshrl.u32 %v473, 16
        %v681 = vpack.i.b16 %v680, %v679
        %v685 = vpack.i.b16 %v521, %v497
        %v687 = vshrl.u32 %v497, 16
        %v688 = vshrl.u32 %v521, 16
        %v689 = vpack.i.b16 %v688, %v687
        %v693 = vpack.i.b16 %v537, %v533
        %v695 = vshrl.u32 %v533, 16
        %v696 = vshrl.u32 %v537, 16
        %v697 = vpack.i.b16 %v696, %v695
        %v701 = vpack.i.b16 %v545, %v541
        %v703 = vshrl.u32 %v541, 16
        %v704 = vshrl.u32 %v545, 16
        %v705 = vpack.i.b16 %v704, %v703
        %v709 = vpack.i.b16 %v553, %v549
        %v711 = vshrl.u32 %v549, 16
        %v712 = vshrl.u32 %v553, 16
        %v713 = vpack.i.b16 %v712, %v711
        %v717 = vpack.i.b16 %v561, %v557
        %v719 = vshrl.u32 %v557, 16
        %v720 = vshrl.u32 %v561, 16
        %v721 = vpack.i.b16 %v720, %v719
        %v725 = vpack.i.b16 %v585, %v578
        %v727 = vshrl.u32 %v578, 16
        %v728 = vshrl.u32 %v585, 16
        %v729 = vpack.i.b16 %v728, %v727
        %v733 = vpack.i.b16 %v599, %v592
        %v735 = vshrl.u32 %v592, 16
        %v736 = vshrl.u32 %v599, 16
        %v737 = vpack.i.b16 %v736, %v735
        %v741 = vpack.i.b16 %v608, %v604
        %v743 = vshrl.u32 %v604, 16
        %v744 = vshrl.u32 %v608, 16
        %v745 = vpack.i.b16 %v744, %v743
        %v749 = vpack.i.b16 %v616, %v612
        %v751 = vshrl.u32 %v612, 16
        %v752 = vshrl.u32 %v616, 16
        %v753 = vpack.i.b16 %v752, %v751
        %v757 = vpack.i.b16 %v624, %v620
        %v758 = vshrl.u32 %v620, 16
        %v759 = vshrl.u32 %v624, 16
        %v760 = vpack.i.b16 %v759, %v758
        %v763 = vpack.i.b16 %v632, %v628
        %v764 = vshrl.u32 %v628, 16
        %v765 = vshrl.u32 %v632, 16
        %v766 = vpack.i.b16 %v765, %v764
        %v767 = vpack.i.b16 %v380, %v378
        %v769 = vpack.i.b16 %v474, %v450
        %v771 = vpack.i.b16 %v384, %v382
        %v773 = vpack.i.b16 %v522, %v498
        %v777 = vpack.i.b16 %v408, %v404
        %v779 = vshrl.u32 %v404, 16
        %v780 = vshrl.u32 %v408, 16
        %v781 = vpack.i.b16 %v780, %v779
        %v785 = vpack.i.b16 %v416, %v412
        %v787 = vshrl.u32 %v412, 16
        %v788 = vshrl.u32 %v416, 16
        %v789 = vpack.i.b16 %v788, %v787
        %v793 = vpack.i.b16 %v424, %v420
        %v795 = vshrl.u32 %v420, 16
        %v796 = vshrl.u32 %v424, 16
        %v797 = vpack.i.b16 %v796, %v795
        %v801 = vpack.i.b16 %v432, %v428
        %v803 = vshrl.u32 %v428, 16
        %v804 = vshrl.u32 %v432, 16
        %v805 = vpack.i.b16 %v804, %v803
        %v809 = vpack.i.b16 %v483, %v459
        %v811 = vshrl.u32 %v459, 16
        %v812 = vshrl.u32 %v483, 16
        %v813 = vpack.i.b16 %v812, %v811
        %v817 = vpack.i.b16 %v531, %v507
        %v819 = vshrl.u32 %v507, 16
        %v820 = vshrl.u32 %v531, 16
        %v821 = vpack.i.b16 %v820, %v819
        %v825 = vpack.i.b16 %v539, %v535
        %v827 = vshrl.u32 %v535, 16
        %v828 = vshrl.u32 %v539, 16
        %v829 = vpack.i.b16 %v828, %v827
        %v833 = vpack.i.b16 %v547, %v543
        %v835 = vshrl.u32 %v543, 16
        %v836 = vshrl.u32 %v547, 16
        %v837 = vpack.i.b16 %v836, %v835
        %v841 = vpack.i.b16 %v555, %v551
        %v843 = vshrl.u32 %v551, 16
        %v844 = vshrl.u32 %v555, 16
        %v845 = vpack.i.b16 %v844, %v843
        %v849 = vpack.i.b16 %v563, %v559
        %v851 = vshrl.u32 %v559, 16
        %v852 = vshrl.u32 %v563, 16
        %v853 = vpack.i.b16 %v852, %v851
        %v857 = vpack.i.b16 %v588, %v581
        %v859 = vshrl.u32 %v581, 16
        %v860 = vshrl.u32 %v588, 16
        %v861 = vpack.i.b16 %v860, %v859
        %v865 = vpack.i.b16 %v602, %v595
        %v867 = vshrl.u32 %v595, 16
        %v868 = vshrl.u32 %v602, 16
        %v869 = vpack.i.b16 %v868, %v867
        %v873 = vpack.i.b16 %v610, %v606
        %v875 = vshrl.u32 %v606, 16
        %v876 = vshrl.u32 %v610, 16
        %v877 = vpack.i.b16 %v876, %v875
        %v881 = vpack.i.b16 %v618, %v614
        %v883 = vshrl.u32 %v614, 16
        %v884 = vshrl.u32 %v618, 16
        %v885 = vpack.i.b16 %v884, %v883
        %v889 = vpack.i.b16 %v626, %v622
        %v890 = vshrl.u32 %v622, 16
        %v891 = vshrl.u32 %v626, 16
        %v892 = vpack.i.b16 %v891, %v890
        %v895 = vpack.i.b16 %v634, %v630
        %v896 = vshrl.u32 %v630, 16
        %v897 = vshrl.u32 %v634, 16
        %v898 = vpack.i.b16 %v897, %v896
        %v899 = vcombine.low %v635, %v645
        %v901 = vunpack.c.l.s4 1983009808
        %v902 = vunpack.c.0.s8 %v901
        %v903 = vlaneseq
        %v904 = vshrl.u32 %v903, 7
        %v905 = vsub.s32 %v902, %v904
        %v906 = vrot.slane %v899, %v905
        %v907 = vcombine.low %v639, %v653
        %v909 = vunpack.c.l.s4 1983009808
        %v910 = vunpack.c.0.s8 %v909
        %v911 = vlaneseq
        %v912 = vshrl.u32 %v911, 7
        %v913 = vsub.s32 %v910, %v912
        %v914 = vrot.slane %v907, %v913
        %v915 = vcombine.low %v906, %v914
        %v916 = vcombine.high %v906, %v914
        %v918 = vunpack.c.l.s4 1934713408
        %v919 = vunpack.c.0.s8 %v918
        %v920 = vlaneseq
        %v921 = vshrl.u32 %v920, 7
        %v922 = vsub.s32 %v919, %v921
        %v923 = vrot.slane %v915, %v922
        %v925 = vunpack.c.l.s4 1934713408
        %v926 = vunpack.c.0.s8 %v925
        %v927 = vlaneseq
        %v928 = vshrl.u32 %v927, 7
        %v929 = vsub.s32 %v926, %v928
        %v930 = vrot.slane %v916, %v929
        %v931 = vcombine.high %v923, 0
        %v932 = vcombine.high %v930, 0
        %v933 = vcombine.low %v637, %v649
        %v935 = vunpack.c.l.s4 1983009808
        %v936 = vunpack.c.0.s8 %v935
        %v937 = vlaneseq
        %v938 = vshrl.u32 %v937, 7
        %v939 = vsub.s32 %v936, %v938
        %v940 = vrot.slane %v933, %v939
        %v941 = vcombine.low %v641, %v657
        %v943 = vunpack.c.l.s4 1983009808
        %v944 = vunpack.c.0.s8 %v943
        %v945 = vlaneseq
        %v946 = vshrl.u32 %v945, 7
        %v947 = vsub.s32 %v944, %v946
        %v948 = vrot.slane %v941, %v947
        %v949 = vcombine.low %v940, %v948
        %v950 = vcombine.high %v940, %v948
        %v952 = vunpack.c.l.s4 1934713408
        %v953 = vunpack.c.0.s8 %v952
        %v954 = vlaneseq
        %v955 = vshrl.u32 %v954, 7
        %v956 = vsub.s32 %v953, %v955
        %v957 = vrot.slane %v949, %v956
        %v959 = vunpack.c.l.s4 1934713408
        %v960 = vunpack.c.0.s8 %v959
        %v961 = vlaneseq
        %v962 = vshrl.u32 %v961, 7
        %v963 = vsub.s32 %v960, %v962
        %v964 = vrot.slane %v950, %v963
        %v965 = vcombine.high %v957, 0
        %v966 = vcombine.high %v964, 0
        %v967 = vcombine.low %v661, %v677
        %v969 = vunpack.c.l.s4 1983009808
        %v970 = vunpack.c.0.s8 %v969
        %v971 = vlaneseq
        %v972 = vshrl.u32 %v971, 7
        %v973 = vsub.s32 %v970, %v972
        %v974 = vrot.slane %v967, %v973
        %v975 = vcombine.low %v669, %v685
        %v977 = vunpack.c.l.s4 1983009808
        %v978 = vunpack.c.0.s8 %v977
        %v979 = vlaneseq
        %v980 = vshrl.u32 %v979, 7
        %v981 = vsub.s32 %v978, %v980
        %v982 = vrot.slane %v975, %v981
        %v983 = vcombine.low %v974, %v982
        %v984 = vcombine.high %v974, %v982
        %v986 = vunpack.c.l.s4 1934713408
        %v987 = vunpack.c.0.s8 %v986
        %v988 = vlaneseq
        %v989 = vshrl.u32 %v988, 7
        %v990 = vsub.s32 %v987, %v989
        %v991 = vrot.slane %v983, %v990
        %v993 = vunpack.c.l.s4 1934713408
        %v994 = vunpack.c.0.s8 %v993
        %v995 = vlaneseq
        %v996 = vshrl.u32 %v995, 7
        %v997 = vsub.s32 %v994, %v996
        %v998 = vrot.slane %v984, %v997
        %v999 = vcombine.high %v991, 0
        %v1000 = vcombine.high %v998, 0
        %v1001 = vcombine.low %v665, %v681
        %v1003 = vunpack.c.l.s4 1983009808
        %v1004 = vunpack.c.0.s8 %v1003
        %v1005 = vlaneseq
        %v1006 = vshrl.u32 %v1005, 7
        %v1007 = vsub.s32 %v1004, %v1006
        %v1008 = vrot.slane %v1001, %v1007
        %v1009 = vcombine.low %v673, %v689
        %v1011 = vunpack.c.l.s4 1983009808
        %v1012 = vunpack.c.0.s8 %v1011
        %v1013 = vlaneseq
        %v1014 = vshrl.u32 %v1013, 7
        %v1015 = vsub.s32 %v1012, %v1014
        %v1016 = vrot.slane %v1009, %v1015
        %v1017 = vcombine.low %v1008, %v1016
        %v1018 = vcombine.high %v1008, %v1016
        %v1020 = vunpack.c.l.s4 1934713408
        %v1021 = vunpack.c.0.s8 %v1020
        %v1022 = vlaneseq
        %v1023 = vshrl.u32 %v1022, 7
        %v1024 = vsub.s32 %v1021, %v1023
        %v1025 = vrot.slane %v1017, %v1024
        %v1027 = vunpack.c.l.s4 1934713408
        %v1028 = vunpack.c.0.s8 %v1027
        %v1029 = vlaneseq
        %v1030 = vshrl.u32 %v1029, 7
        %v1031 = vsub.s32 %v1028, %v1030
        %v1032 = vrot.slane %v1018, %v1031
        %v1033 = vcombine.high %v1025, 0
        %v1034 = vcombine.high %v1032, 0
        %v1035 = vcombine.low %v693, %v709
        %v1037 = vunpack.c.l.s4 1983009808
        %v1038 = vunpack.c.0.s8 %v1037
        %v1039 = vlaneseq
        %v1040 = vshrl.u32 %v1039, 7
        %v1041 = vsub.s32 %v1038, %v1040
        %v1042 = vrot.slane %v1035, %v1041
        %v1043 = vcombine.low %v701, %v717
        %v1045 = vunpack.c.l.s4 1983009808
        %v1046 = vunpack.c.0.s8 %v1045
        %v1047 = vlaneseq
        %v1048 = vshrl.u32 %v1047, 7
        %v1049 = vsub.s32 %v1046, %v1048
        %v1050 = vrot.slane %v1043, %v1049
        %v1051 = vcombine.low %v1042, %v1050
        %v1052 = vcombine.high %v1042, %v1050
        %v1054 = vunpack.c.l.s4 1934713408
        %v1055 = vunpack.c.0.s8 %v1054
        %v1056 = vlaneseq
        %v1057 = vshrl.u32 %v1056, 7
        %v1058 = vsub.s32 %v1055, %v1057
        %v1059 = vrot.slane %v1051, %v1058
        %v1061 = vunpack.c.l.s4 1934713408
        %v1062 = vunpack.c.0.s8 %v1061
        %v1063 = vlaneseq
        %v1064 = vshrl.u32 %v1063, 7
        %v1065 = vsub.s32 %v1062, %v1064
        %v1066 = vrot.slane %v1052, %v1065
        %v1067 = vcombine.high %v1059, 0
        %v1068 = vcombine.high %v1066, 0
        %v1069 = vcombine.low %v697, %v713
        %v1071 = vunpack.c.l.s4 1983009808
        %v1072 = vunpack.c.0.s8 %v1071
        %v1073 = vlaneseq
        %v1074 = vshrl.u32 %v1073, 7
        %v1075 = vsub.s32 %v1072, %v1074
        %v1076 = vrot.slane %v1069, %v1075
        %v1077 = vcombine.low %v705, %v721
        %v1079 = vunpack.c.l.s4 1983009808
        %v1080 = vunpack.c.0.s8 %v1079
        %v1081 = vlaneseq
        %v1082 = vshrl.u32 %v1081, 7
        %v1083 = vsub.s32 %v1080, %v1082
        %v1084 = vrot.slane %v1077, %v1083
        %v1085 = vcombine.low %v1076, %v1084
        %v1086 = vcombine.high %v1076, %v1084
        %v1088 = vunpack.c.l.s4 1934713408
        %v1089 = vunpack.c.0.s8 %v1088
        %v1090 = vlaneseq
        %v1091 = vshrl.u32 %v1090, 7
        %v1092 = vsub.s32 %v1089, %v1091
        %v1093 = vrot.slane %v1085, %v1092
        %v1095 = vunpack.c.l.s4 1934713408
        %v1096 = vunpack.c.0.s8 %v1095
        %v1097 = vlaneseq
        %v1098 = vshrl.u32 %v1097, 7
        %v1099 = vsub.s32 %v1096, %v1098
        %v1100 = vrot.slane %v1086, %v1099
        %v1101 = vcombine.high %v1093, 0
        %v1102 = vcombine.high %v1100, 0
        %v1103 = vcombine.low %v725, %v741
        %v1105 = vunpack.c.l.s4 1983009808
        %v1106 = vunpack.c.0.s8 %v1105
        %v1107 = vlaneseq
        %v1108 = vshrl.u32 %v1107, 7
        %v1109 = vsub.s32 %v1106, %v1108
        %v1110 = vrot.slane %v1103, %v1109
        %v1111 = vcombine.low %v733, %v749
        %v1113 = vunpack.c.l.s4 1983009808
        %v1114 = vunpack.c.0.s8 %v1113
        %v1115 = vlaneseq
        %v1116 = vshrl.u32 %v1115, 7
        %v1117 = vsub.s32 %v1114, %v1116
        %v1118 = vrot.slane %v1111, %v1117
        %v1119 = vcombine.low %v1110, %v1118
        %v1120 = vcombine.high %v1110, %v1118
        %v1122 = vunpack.c.l.s4 1934713408
        %v1123 = vunpack.c.0.s8 %v1122
        %v1124 = vlaneseq
        %v1125 = vshrl.u32 %v1124, 7
        %v1126 = vsub.s32 %v1123, %v1125
        %v1127 = vrot.slane %v1119, %v1126
        %v1129 = vunpack.c.l.s4 1934713408
        %v1130 = vunpack.c.0.s8 %v1129
        %v1131 = vlaneseq
        %v1132 = vshrl.u32 %v1131, 7
        %v1133 = vsub.s32 %v1130, %v1132
        %v1134 = vrot.slane %v1120, %v1133
        %v1135 = vcombine.high %v1127, 0
        %v1136 = vcombine.high %v1134, 0
        %v1137 = vcombine.low %v729, %v745
        %v1139 = vunpack.c.l.s4 1983009808
        %v1140 = vunpack.c.0.s8 %v1139
        %v1141 = vlaneseq
        %v1142 = vshrl.u32 %v1141, 7
        %v1143 = vsub.s32 %v1140, %v1142
        %v1144 = vrot.slane %v1137, %v1143
        %v1145 = vcombine.low %v737, %v753
        %v1147 = vunpack.c.l.s4 1983009808
        %v1148 = vunpack.c.0.s8 %v1147
        %v1149 = vlaneseq
        %v1150 = vshrl.u32 %v1149, 7
        %v1151 = vsub.s32 %v1148, %v1150
        %v1152 = vrot.slane %v1145, %v1151
        %v1153 = vcombine.low %v1144, %v1152
        %v1154 = vcombine.high %v1144, %v1152
        %v1156 = vunpack.c.l.s4 1934713408
        %v1157 = vunpack.c.0.s8 %v1156
        %v1158 = vlaneseq
        %v1159 = vshrl.u32 %v1158, 7
        %v1160 = vsub.s32 %v1157, %v1159
        %v1161 = vrot.slane %v1153, %v1160
        %v1163 = vunpack.c.l.s4 1934713408
        %v1164 = vunpack.c.0.s8 %v1163
        %v1165 = vlaneseq
        %v1166 = vshrl.u32 %v1165, 7
        %v1167 = vsub.s32 %v1164, %v1166
        %v1168 = vrot.slane %v1154, %v1167
        %v1169 = vcombine.high %v1161, 0
        %v1170 = vcombine.high %v1168, 0
        %v1173 = vunpack.c.l.s4 1983009808
        %v1174 = vunpack.c.0.s8 %v1173
        %v1175 = vlaneseq
        %v1176 = vshrl.u32 %v1175, 7
        %v1177 = vsub.s32 %v1174, %v1176
        %v1178 = vrot.slane %v757, %v1177
        %v1181 = vunpack.c.l.s4 1983009808
        %v1182 = vunpack.c.0.s8 %v1181
        %v1183 = vlaneseq
        %v1184 = vshrl.u32 %v1183, 7
        %v1185 = vsub.s32 %v1182, %v1184
        %v1186 = vrot.slane %v763, %v1185
        %v1187 = vcombine.low %v1178, %v1186
        %v1188 = vcombine.high %v1178, %v1186
        %v1190 = vunpack.c.l.s4 1934713408
        %v1191 = vunpack.c.0.s8 %v1190
        %v1192 = vlaneseq
        %v1193 = vshrl.u32 %v1192, 7
        %v1194 = vsub.s32 %v1191, %v1193
        %v1195 = vrot.slane %v1187, %v1194
        %v1197 = vunpack.c.l.s4 1934713408
        %v1198 = vunpack.c.0.s8 %v1197
        %v1199 = vlaneseq
        %v1200 = vshrl.u32 %v1199, 7
        %v1201 = vsub.s32 %v1198, %v1200
        %v1202 = vrot.slane %v1188, %v1201
        %v1203 = vcombine.high %v1195, 0
        %v1204 = vcombine.high %v1202, 0
        %v1207 = vunpack.c.l.s4 1983009808
        %v1208 = vunpack.c.0.s8 %v1207
        %v1209 = vlaneseq
        %v1210 = vshrl.u32 %v1209, 7
        %v1211 = vsub.s32 %v1208, %v1210
        %v1212 = vrot.slane %v760, %v1211
        %v1215 = vunpack.c.l.s4 1983009808
        %v1216 = vunpack.c.0.s8 %v1215
        %v1217 = vlaneseq
        %v1218 = vshrl.u32 %v1217, 7
        %v1219 = vsub.s32 %v1216, %v1218
        %v1220 = vrot.slane %v766, %v1219
        %v1221 = vcombine.low %v1212, %v1220
        %v1222 = vcombine.high %v1212, %v1220
        %v1224 = vunpack.c.l.s4 1934713408
        %v1225 = vunpack.c.0.s8 %v1224
        %v1226 = vlaneseq
        %v1227 = vshrl.u32 %v1226, 7
        %v1228 = vsub.s32 %v1225, %v1227
        %v1229 = vrot.slane %v1221, %v1228
        %v1231 = vunpack.c.l.s4 1934713408
        %v1232 = vunpack.c.0.s8 %v1231
        %v1233 = vlaneseq
        %v1234 = vshrl.u32 %v1233, 7
        %v1235 = vsub.s32 %v1232, %v1234
        %v1236 = vrot.slane %v1222, %v1235
        %v1237 = vcombine.high %v1229, 0
        %v1238 = vcombine.high %v1236, 0
        %v1239 = vcombine.low %v767, %v777
        %v1241 = vunpack.c.l.s4 1983009808
        %v1242 = vunpack.c.0.s8 %v1241
        %v1243 = vlaneseq
        %v1244 = vshrl.u32 %v1243, 7
        %v1245 = vsub.s32 %v1242, %v1244
        %v1246 = vrot.slane %v1239, %v1245
        %v1247 = vcombine.low %v771, %v785
        %v1249 = vunpack.c.l.s4 1983009808
        %v1250 = vunpack.c.0.s8 %v1249
        %v1251 = vlaneseq
        %v1252 = vshrl.u32 %v1251, 7
        %v1253 = vsub.s32 %v1250, %v1252
        %v1254 = vrot.slane %v1247, %v1253
        %v1255 = vcombine.low %v1246, %v1254
        %v1256 = vcombine.high %v1246, %v1254
        %v1258 = vunpack.c.l.s4 1934713408
        %v1259 = vunpack.c.0.s8 %v1258
        %v1260 = vlaneseq
        %v1261 = vshrl.u32 %v1260, 7
        %v1262 = vsub.s32 %v1259, %v1261
        %v1263 = vrot.slane %v1255, %v1262
        %v1265 = vunpack.c.l.s4 1934713408
        %v1266 = vunpack.c.0.s8 %v1265
        %v1267 = vlaneseq
        %v1268 = vshrl.u32 %v1267, 7
        %v1269 = vsub.s32 %v1266, %v1268
        %v1270 = vrot.slane %v1256, %v1269
        %v1271 = vcombine.high %v1263, 0
        %v1272 = vcombine.high %v1270, 0
        %v1273 = vcombine.low %v769, %v781
        %v1275 = vunpack.c.l.s4 1983009808
        %v1276 = vunpack.c.0.s8 %v1275
        %v1277 = vlaneseq
        %v1278 = vshrl.u32 %v1277, 7
        %v1279 = vsub.s32 %v1276, %v1278
        %v1280 = vrot.slane %v1273, %v1279
        %v1281 = vcombine.low %v773, %v789
        %v1283 = vunpack.c.l.s4 1983009808
        %v1284 = vunpack.c.0.s8 %v1283
        %v1285 = vlaneseq
        %v1286 = vshrl.u32 %v1285, 7
        %v1287 = vsub.s32 %v1284, %v1286
        %v1288 = vrot.slane %v1281, %v1287
        %v1289 = vcombine.low %v1280, %v1288
        %v1290 = vcombine.high %v1280, %v1288
        %v1292 = vunpack.c.l.s4 1934713408
        %v1293 = vunpack.c.0.s8 %v1292
        %v1294 = vlaneseq
        %v1295 = vshrl.u32 %v1294, 7
        %v1296 = vsub.s32 %v1293, %v1295
        %v1297 = vrot.slane %v1289, %v1296
        %v1299 = vunpack.c.l.s4 1934713408
        %v1300 = vunpack.c.0.s8 %v1299
        %v1301 = vlaneseq
        %v1302 = vshrl.u32 %v1301, 7
        %v1303 = vsub.s32 %v1300, %v1302
        %v1304 = vrot.slane %v1290, %v1303
        %v1305 = vcombine.high %v1297, 0
        %v1306 = vcombine.high %v1304, 0
        %v1307 = vcombine.low %v793, %v809
        %v1309 = vunpack.c.l.s4 1983009808
        %v1310 = vunpack.c.0.s8 %v1309
        %v1311 = vlaneseq
        %v1312 = vshrl.u32 %v1311, 7
        %v1313 = vsub.s32 %v1310, %v1312
        %v1314 = vrot.slane %v1307, %v1313
        %v1315 = vcombine.low %v801, %v817
        %v1317 = vunpack.c.l.s4 1983009808
        %v1318 = vunpack.c.0.s8 %v1317
        %v1319 = vlaneseq
        %v1320 = vshrl.u32 %v1319, 7
        %v1321 = vsub.s32 %v1318, %v1320
        %v1322 = vrot.slane %v1315, %v1321
        %v1323 = vcombine.low %v1314, %v1322
        %v1324 = vcombine.high %v1314, %v1322
        %v1326 = vunpack.c.l.s4 1934713408
        %v1327 = vunpack.c.0.s8 %v1326
        %v1328 = vlaneseq
        %v1329 = vshrl.u32 %v1328, 7
        %v1330 = vsub.s32 %v1327, %v1329
        %v1331 = vrot.slane %v1323, %v1330
        %v1333 = vunpack.c.l.s4 1934713408
        %v1334 = vunpack.c.0.s8 %v1333
        %v1335 = vlaneseq
        %v1336 = vshrl.u32 %v1335, 7
        %v1337 = vsub.s32 %v1334, %v1336
        %v1338 = vrot.slane %v1324, %v1337
        %v1339 = vcombine.high %v1331, 0
        %v1340 = vcombine.high %v1338, 0
        %v1341 = vcombine.low %v797, %v813
        %v1343 = vunpack.c.l.s4 1983009808
        %v1344 = vunpack.c.0.s8 %v1343
        %v1345 = vlaneseq
        %v1346 = vshrl.u32 %v1345, 7
        %v1347 = vsub.s32 %v1344, %v1346
        %v1348 = vrot.slane %v1341, %v1347
        %v1349 = vcombine.low %v805, %v821
        %v1351 = vunpack.c.l.s4 1983009808
        %v1352 = vunpack.c.0.s8 %v1351
        %v1353 = vlaneseq
        %v1354 = vshrl.u32 %v1353, 7
        %v1355 = vsub.s32 %v1352, %v1354
        %v1356 = vrot.slane %v1349, %v1355
        %v1357 = vcombine.low %v1348, %v1356
        %v1358 = vcombine.high %v1348, %v1356
        %v1360 = vunpack.c.l.s4 1934713408
        %v1361 = vunpack.c.0.s8 %v1360
        %v1362 = vlaneseq
        %v1363 = vshrl.u32 %v1362, 7
        %v1364 = vsub.s32 %v1361, %v1363
        %v1365 = vrot.slane %v1357, %v1364
        %v1367 = vunpack.c.l.s4 1934713408
        %v1368 = vunpack.c.0.s8 %v1367
        %v1369 = vlaneseq
        %v1370 = vshrl.u32 %v1369, 7
        %v1371 = vsub.s32 %v1368, %v1370
        %v1372 = vrot.slane %v1358, %v1371
        %v1373 = vcombine.high %v1365, 0
        %v1374 = vcombine.high %v1372, 0
        %v1375 = vcombine.low %v825, %v841
        %v1377 = vunpack.c.l.s4 1983009808
        %v1378 = vunpack.c.0.s8 %v1377
        %v1379 = vlaneseq
        %v1380 = vshrl.u32 %v1379, 7
        %v1381 = vsub.s32 %v1378, %v1380
        %v1382 = vrot.slane %v1375, %v1381
        %v1383 = vcombine.low %v833, %v849
        %v1385 = vunpack.c.l.s4 1983009808
        %v1386 = vunpack.c.0.s8 %v1385
        %v1387 = vlaneseq
        %v1388 = vshrl.u32 %v1387, 7
        %v1389 = vsub.s32 %v1386, %v1388
        %v1390 = vrot.slane %v1383, %v1389
        %v1391 = vcombine.low %v1382, %v1390
        %v1392 = vcombine.high %v1382, %v1390
        %v1394 = vunpack.c.l.s4 1934713408
        %v1395 = vunpack.c.0.s8 %v1394
        %v1396 = vlaneseq
        %v1397 = vshrl.u32 %v1396, 7
        %v1398 = vsub.s32 %v1395, %v1397
        %v1399 = vrot.slane %v1391, %v1398
        %v1401 = vunpack.c.l.s4 1934713408
        %v1402 = vunpack.c.0.s8 %v1401
        %v1403 = vlaneseq
        %v1404 = vshrl.u32 %v1403, 7
        %v1405 = vsub.s32 %v1402, %v1404
        %v1406 = vrot.slane %v1392, %v1405
        %v1407 = vcombine.high %v1399, 0
        %v1408 = vcombine.high %v1406, 0
        %v1409 = vcombine.low %v829, %v845
        %v1411 = vunpack.c.l.s4 1983009808
        %v1412 = vunpack.c.0.s8 %v1411
        %v1413 = vlaneseq
        %v1414 = vshrl.u32 %v1413, 7
        %v1415 = vsub.s32 %v1412, %v1414
        %v1416 = vrot.slane %v1409, %v1415
        %v1417 = vcombine.low %v837, %v853
        %v1419 = vunpack.c.l.s4 1983009808
        %v1420 = vunpack.c.0.s8 %v1419
        %v1421 = vlaneseq
        %v1422 = vshrl.u32 %v1421, 7
        %v1423 = vsub.s32 %v1420, %v1422
        %v1424 = vrot.slane %v1417, %v1423
        %v1425 = vcombine.low %v1416, %v1424
        %v1426 = vcombine.high %v1416, %v1424
        %v1428 = vunpack.c.l.s4 1934713408
        %v1429 = vunpack.c.0.s8 %v1428
        %v1430 = vlaneseq
        %v1431 = vshrl.u32 %v1430, 7
        %v1432 = vsub.s32 %v1429, %v1431
        %v1433 = vrot.slane %v1425, %v1432
        %v1435 = vunpack.c.l.s4 1934713408
        %v1436 = vunpack.c.0.s8 %v1435
        %v1437 = vlaneseq
        %v1438 = vshrl.u32 %v1437, 7
        %v1439 = vsub.s32 %v1436, %v1438
        %v1440 = vrot.slane %v1426, %v1439
        %v1441 = vcombine.high %v1433, 0
        %v1442 = vcombine.high %v1440, 0
        %v1443 = vcombine.low %v857, %v873
        %v1445 = vunpack.c.l.s4 1983009808
        %v1446 = vunpack.c.0.s8 %v1445
        %v1447 = vlaneseq
        %v1448 = vshrl.u32 %v1447, 7
        %v1449 = vsub.s32 %v1446, %v1448
        %v1450 = vrot.slane %v1443, %v1449
        %v1451 = vcombine.low %v865, %v881
        %v1453 = vunpack.c.l.s4 1983009808
        %v1454 = vunpack.c.0.s8 %v1453
        %v1455 = vlaneseq
        %v1456 = vshrl.u32 %v1455, 7
        %v1457 = vsub.s32 %v1454, %v1456
        %v1458 = vrot.slane %v1451, %v1457
        %v1459 = vcombine.low %v1450, %v1458
        %v1460 = vcombine.high %v1450, %v1458
        %v1462 = vunpack.c.l.s4 1934713408
        %v1463 = vunpack.c.0.s8 %v1462
        %v1464 = vlaneseq
        %v1465 = vshrl.u32 %v1464, 7
        %v1466 = vsub.s32 %v1463, %v1465
        %v1467 = vrot.slane %v1459, %v1466
        %v1469 = vunpack.c.l.s4 1934713408
        %v1470 = vunpack.c.0.s8 %v1469
        %v1471 = vlaneseq
        %v1472 = vshrl.u32 %v1471, 7
        %v1473 = vsub.s32 %v1470, %v1472
        %v1474 = vrot.slane %v1460, %v1473
        %v1475 = vcombine.high %v1467, 0
        %v1476 = vcombine.high %v1474, 0
        %v1477 = vcombine.low %v861, %v877
        %v1479 = vunpack.c.l.s4 1983009808
        %v1480 = vunpack.c.0.s8 %v1479
        %v1481 = vlaneseq
        %v1482 = vshrl.u32 %v1481, 7
        %v1483 = vsub.s32 %v1480, %v1482
        %v1484 = vrot.slane %v1477, %v1483
        %v1485 = vcombine.low %v869, %v885
        %v1487 = vunpack.c.l.s4 1983009808
        %v1488 = vunpack.c.0.s8 %v1487
        %v1489 = vlaneseq
        %v1490 = vshrl.u32 %v1489, 7
        %v1491 = vsub.s32 %v1488, %v1490
        %v1492 = vrot.slane %v1485, %v1491
        %v1493 = vcombine.low %v1484, %v1492
        %v1494 = vcombine.high %v1484, %v1492
        %v1496 = vunpack.c.l.s4 1934713408
        %v1497 = vunpack.c.0.s8 %v1496
        %v1498 = vlaneseq
        %v1499 = vshrl.u32 %v1498, 7
        %v1500 = vsub.s32 %v1497, %v1499
        %v1501 = vrot.slane %v1493, %v1500
        %v1503 = vunpack.c.l.s4 1934713408
        %v1504 = vunpack.c.0.s8 %v1503
        %v1505 = vlaneseq
        %v1506 = vshrl.u32 %v1505, 7
        %v1507 = vsub.s32 %v1504, %v1506
        %v1508 = vrot.slane %v1494, %v1507
        %v1509 = vcombine.high %v1501, 0
        %v1510 = vcombine.high %v1508, 0
        %v1513 = vunpack.c.l.s4 1983009808
        %v1514 = vunpack.c.0.s8 %v1513
        %v1515 = vlaneseq
        %v1516 = vshrl.u32 %v1515, 7
        %v1517 = vsub.s32 %v1514, %v1516
        %v1518 = vrot.slane %v889, %v1517
        %v1521 = vunpack.c.l.s4 1983009808
        %v1522 = vunpack.c.0.s8 %v1521
        %v1523 = vlaneseq
        %v1524 = vshrl.u32 %v1523, 7
        %v1525 = vsub.s32 %v1522, %v1524
        %v1526 = vrot.slane %v895, %v1525
        %v1527 = vcombine.low %v1518, %v1526
        %v1528 = vcombine.high %v1518, %v1526
        %v1530 = vunpack.c.l.s4 1934713408
        %v1531 = vunpack.c.0.s8 %v1530
        %v1532 = vlaneseq
        %v1533 = vshrl.u32 %v1532, 7
        %v1534 = vsub.s32 %v1531, %v1533
        %v1535 = vrot.slane %v1527, %v1534
        %v1537 = vunpack.c.l.s4 1934713408
        %v1538 = vunpack.c.0.s8 %v1537
        %v1539 = vlaneseq
        %v1540 = vshrl.u32 %v1539, 7
        %v1541 = vsub.s32 %v1538, %v1540
        %v1542 = vrot.slane %v1528, %v1541
        %v1543 = vcombine.high %v1535, 0
        %v1544 = vcombine.high %v1542, 0
        %v1547 = vunpack.c.l.s4 1983009808
        %v1548 = vunpack.c.0.s8 %v1547
        %v1549 = vlaneseq
        %v1550 = vshrl.u32 %v1549, 7
        %v1551 = vsub.s32 %v1548, %v1550
        %v1552 = vrot.slane %v892, %v1551
        %v1555 = vunpack.c.l.s4 1983009808
        %v1556 = vunpack.c.0.s8 %v1555
        %v1557 = vlaneseq
        %v1558 = vshrl.u32 %v1557, 7
        %v1559 = vsub.s32 %v1556, %v1558
        %v1560 = vrot.slane %v898, %v1559
        %v1561 = vcombine.low %v1552, %v1560
        %v1562 = vcombine.high %v1552, %v1560
        %v1564 = vunpack.c.l.s4 1934713408
        %v1565 = vunpack.c.0.s8 %v1564
        %v1566 = vlaneseq
        %v1567 = vshrl.u32 %v1566, 7
        %v1568 = vsub.s32 %v1565, %v1567
        %v1569 = vrot.slane %v1561, %v1568
        %v1571 = vunpack.c.l.s4 1934713408
        %v1572 = vunpack.c.0.s8 %v1571
        %v1573 = vlaneseq
        %v1574 = vshrl.u32 %v1573, 7
        %v1575 = vsub.s32 %v1572, %v1574
        %v1576 = vrot.slane %v1562, %v1575
        %v1577 = vcombine.high %v1569, 0
        %v1578 = vcombine.high %v1576, 0
        %v1584 = vunpack.c.l.b16 %v923
        %v1585 = vunpack.c.l.b16 %v991
        %v1586 = vunpack.c.l.b16 %v1059
        %v1587 = vunpack.c.l.b16 %v1127
        %v1588 = vunpack.c.l.b16 %v1195
        %v1589 = vpack.c.b16 %v1585, %v1584
        %v1590 = vpack.c.b16 %v1587, %v1586
        %v1591 = vpack.c.b16 %v1588, %v1588
        %v1597 = vunpack.c.l.b16 %v957
        %v1598 = vunpack.c.l.b16 %v1025
        %v1599 = vunpack.c.l.b16 %v1093
        %v1600 = vunpack.c.l.b16 %v1161
        %v1601 = vunpack.c.l.b16 %v1229
        %v1602 = vpack.c.b16 %v1598, %v1597
        %v1603 = vpack.c.b16 %v1600, %v1599
        %v1604 = vpack.c.b16 %v1601, %v1601
        %1605 = vrot.lane.b32.xlu0 %v1602, 16
        %v1606 = vpop.permute.xlu0 %1605
        %1607 = vrot.lane.b32.xlu0 %v1603, 16
        %v1608 = vpop.permute.xlu0 %1607
        %1609 = vrot.lane.b32.xlu0 %v1604, 16
        %v1610 = vpop.permute.xlu0 %1609
        %v1616 = vunpack.c.l.b16 %v931
        %v1617 = vunpack.c.l.b16 %v999
        %v1618 = vunpack.c.l.b16 %v1067
        %v1619 = vunpack.c.l.b16 %v1135
        %v1620 = vunpack.c.l.b16 %v1203
        %v1621 = vpack.c.b16 %v1617, %v1616
        %v1622 = vpack.c.b16 %v1619, %v1618
        %v1623 = vpack.c.b16 %v1620, %v1620
        %1624 = vrot.lane.b32.xlu0 %v1621, 32
        %v1625 = vpop.permute.xlu0 %1624
        %1626 = vrot.lane.b32.xlu0 %v1622, 32
        %v1627 = vpop.permute.xlu0 %1626
        %1628 = vrot.lane.b32.xlu0 %v1623, 32
        %v1629 = vpop.permute.xlu0 %1628
        %v1635 = vunpack.c.l.b16 %v965
        %v1636 = vunpack.c.l.b16 %v1033
        %v1637 = vunpack.c.l.b16 %v1101
        %v1638 = vunpack.c.l.b16 %v1169
        %v1639 = vunpack.c.l.b16 %v1237
        %v1640 = vpack.c.b16 %v1636, %v1635
        %v1641 = vpack.c.b16 %v1638, %v1637
        %v1642 = vpack.c.b16 %v1639, %v1639
        %1643 = vrot.lane.b32.xlu0 %v1640, 48
        %v1644 = vpop.permute.xlu0 %1643
        %1645 = vrot.lane.b32.xlu0 %v1641, 48
        %v1646 = vpop.permute.xlu0 %1645
        %1647 = vrot.lane.b32.xlu0 %v1642, 48
        %v1648 = vpop.permute.xlu0 %1647
        %v1654 = vunpack.c.l.b16 %v930
        %v1655 = vunpack.c.l.b16 %v998
        %v1656 = vunpack.c.l.b16 %v1066
        %v1657 = vunpack.c.l.b16 %v1134
        %v1658 = vunpack.c.l.b16 %v1202
        %v1659 = vpack.c.b16 %v1655, %v1654
        %v1660 = vpack.c.b16 %v1657, %v1656
        %v1661 = vpack.c.b16 %v1658, %v1658
        %1662 = vrot.lane.b32.xlu0 %v1659, 64
        %v1663 = vpop.permute.xlu0 %1662
        %1664 = vrot.lane.b32.xlu0 %v1660, 64
        %v1665 = vpop.permute.xlu0 %1664
        %1666 = vrot.lane.b32.xlu0 %v1661, 64
        %v1667 = vpop.permute.xlu0 %1666
        %v1673 = vunpack.c.l.b16 %v964
        %v1674 = vunpack.c.l.b16 %v1032
        %v1675 = vunpack.c.l.b16 %v1100
        %v1676 = vunpack.c.l.b16 %v1168
        %v1677 = vunpack.c.l.b16 %v1236
        %v1678 = vpack.c.b16 %v1674, %v1673
        %v1679 = vpack.c.b16 %v1676, %v1675
        %v1680 = vpack.c.b16 %v1677, %v1677
        %1681 = vrot.lane.b32.xlu0 %v1678, 80
        %v1682 = vpop.permute.xlu0 %1681
        %1683 = vrot.lane.b32.xlu0 %v1679, 80
        %v1684 = vpop.permute.xlu0 %1683
        %1685 = vrot.lane.b32.xlu0 %v1680, 80
        %v1686 = vpop.permute.xlu0 %1685
        %v1692 = vunpack.c.l.b16 %v932
        %v1693 = vunpack.c.l.b16 %v1000
        %v1694 = vunpack.c.l.b16 %v1068
        %v1695 = vunpack.c.l.b16 %v1136
        %v1696 = vunpack.c.l.b16 %v1204
        %v1697 = vpack.c.b16 %v1693, %v1692
        %v1698 = vpack.c.b16 %v1695, %v1694
        %v1699 = vpack.c.b16 %v1696, %v1696
        %1700 = vrot.lane.b32.xlu0 %v1697, 96
        %v1701 = vpop.permute.xlu0 %1700
        %1702 = vrot.lane.b32.xlu0 %v1698, 96
        %v1703 = vpop.permute.xlu0 %1702
        %1704 = vrot.lane.b32.xlu0 %v1699, 96
        %v1705 = vpop.permute.xlu0 %1704
        %v1711 = vunpack.c.l.b16 %v966
        %v1712 = vunpack.c.l.b16 %v1034
        %v1713 = vunpack.c.l.b16 %v1102
        %v1714 = vunpack.c.l.b16 %v1170
        %v1715 = vunpack.c.l.b16 %v1238
        %v1716 = vpack.c.b16 %v1712, %v1711
        %v1717 = vpack.c.b16 %v1714, %v1713
        %v1718 = vpack.c.b16 %v1715, %v1715
        %1719 = vrot.lane.b32.xlu0 %v1716, 112
        %v1720 = vpop.permute.xlu0 %1719
        %1721 = vrot.lane.b32.xlu0 %v1717, 112
        %v1722 = vpop.permute.xlu0 %1721
        %1723 = vrot.lane.b32.xlu0 %v1718, 112
        %v1724 = vpop.permute.xlu0 %1723
        %v1730 = vunpack.c.l.b16 %v1263
        %v1731 = vunpack.c.l.b16 %v1331
        %v1732 = vunpack.c.l.b16 %v1399
        %v1733 = vunpack.c.l.b16 %v1467
        %v1734 = vunpack.c.l.b16 %v1535
        %v1735 = vpack.c.b16 %v1731, %v1730
        %v1736 = vpack.c.b16 %v1733, %v1732
        %v1737 = vpack.c.b16 %v1734, %v1734
        %v1743 = vunpack.c.l.b16 %v1297
        %v1744 = vunpack.c.l.b16 %v1365
        %v1745 = vunpack.c.l.b16 %v1433
        %v1746 = vunpack.c.l.b16 %v1501
        %v1747 = vunpack.c.l.b16 %v1569
        %v1748 = vpack.c.b16 %v1744, %v1743
        %v1749 = vpack.c.b16 %v1746, %v1745
        %v1750 = vpack.c.b16 %v1747, %v1747
        %1751 = vrot.lane.b32.xlu0 %v1748, 16
        %v1752 = vpop.permute.xlu0 %1751
        %1753 = vrot.lane.b32.xlu0 %v1749, 16
        %v1754 = vpop.permute.xlu0 %1753
        %1755 = vrot.lane.b32.xlu0 %v1750, 16
        %v1756 = vpop.permute.xlu0 %1755
        %v1762 = vunpack.c.l.b16 %v1271
        %v1763 = vunpack.c.l.b16 %v1339
        %v1764 = vunpack.c.l.b16 %v1407
        %v1765 = vunpack.c.l.b16 %v1475
        %v1766 = vunpack.c.l.b16 %v1543
        %v1767 = vpack.c.b16 %v1763, %v1762
        %v1768 = vpack.c.b16 %v1765, %v1764
        %v1769 = vpack.c.b16 %v1766, %v1766
        %1770 = vrot.lane.b32.xlu0 %v1767, 32
        %v1771 = vpop.permute.xlu0 %1770
        %1772 = vrot.lane.b32.xlu0 %v1768, 32
        %v1773 = vpop.permute.xlu0 %1772
        %1774 = vrot.lane.b32.xlu0 %v1769, 32
        %v1775 = vpop.permute.xlu0 %1774
        %v1781 = vunpack.c.l.b16 %v1305
        %v1782 = vunpack.c.l.b16 %v1373
        %v1783 = vunpack.c.l.b16 %v1441
        %v1784 = vunpack.c.l.b16 %v1509
        %v1785 = vunpack.c.l.b16 %v1577
        %v1786 = vpack.c.b16 %v1782, %v1781
        %v1787 = vpack.c.b16 %v1784, %v1783
        %v1788 = vpack.c.b16 %v1785, %v1785
        %1789 = vrot.lane.b32.xlu0 %v1786, 48
        %v1790 = vpop.permute.xlu0 %1789
        %1791 = vrot.lane.b32.xlu0 %v1787, 48
        %v1792 = vpop.permute.xlu0 %1791
        %1793 = vrot.lane.b32.xlu0 %v1788, 48
        %v1794 = vpop.permute.xlu0 %1793
        %v1800 = vunpack.c.l.b16 %v1270
        %v1801 = vunpack.c.l.b16 %v1338
        %v1802 = vunpack.c.l.b16 %v1406
        %v1803 = vunpack.c.l.b16 %v1474
        %v1804 = vunpack.c.l.b16 %v1542
        %v1805 = vpack.c.b16 %v1801, %v1800
        %v1806 = vpack.c.b16 %v1803, %v1802
        %v1807 = vpack.c.b16 %v1804, %v1804
        %1808 = vrot.lane.b32.xlu0 %v1805, 64
        %v1809 = vpop.permute.xlu0 %1808
        %1810 = vrot.lane.b32.xlu0 %v1806, 64
        %v1811 = vpop.permute.xlu0 %1810
        %1812 = vrot.lane.b32.xlu0 %v1807, 64
        %v1813 = vpop.permute.xlu0 %1812
        %v1819 = vunpack.c.l.b16 %v1304
        %v1820 = vunpack.c.l.b16 %v1372
        %v1821 = vunpack.c.l.b16 %v1440
        %v1822 = vunpack.c.l.b16 %v1508
        %v1823 = vunpack.c.l.b16 %v1576
        %v1824 = vpack.c.b16 %v1820, %v1819
        %v1825 = vpack.c.b16 %v1822, %v1821
        %v1826 = vpack.c.b16 %v1823, %v1823
        %1827 = vrot.lane.b32.xlu0 %v1824, 80
        %v1828 = vpop.permute.xlu0 %1827
        %1829 = vrot.lane.b32.xlu0 %v1825, 80
        %v1830 = vpop.permute.xlu0 %1829
        %1831 = vrot.lane.b32.xlu0 %v1826, 80
        %v1832 = vpop.permute.xlu0 %1831
        %v1838 = vunpack.c.l.b16 %v1272
        %v1839 = vunpack.c.l.b16 %v1340
        %v1840 = vunpack.c.l.b16 %v1408
        %v1841 = vunpack.c.l.b16 %v1476
        %v1842 = vunpack.c.l.b16 %v1544
        %v1843 = vpack.c.b16 %v1839, %v1838
        %v1844 = vpack.c.b16 %v1841, %v1840
        %v1845 = vpack.c.b16 %v1842, %v1842
        %1846 = vrot.lane.b32.xlu0 %v1843, 96
        %v1847 = vpop.permute.xlu0 %1846
        %1848 = vrot.lane.b32.xlu0 %v1844, 96
        %v1849 = vpop.permute.xlu0 %1848
        %1850 = vrot.lane.b32.xlu0 %v1845, 96
        %v1851 = vpop.permute.xlu0 %1850
        %v1857 = vunpack.c.l.b16 %v1306
        %v1858 = vunpack.c.l.b16 %v1374
        %v1859 = vunpack.c.l.b16 %v1442
        %v1860 = vunpack.c.l.b16 %v1510
        %v1861 = vunpack.c.l.b16 %v1578
        %v1862 = vpack.c.b16 %v1858, %v1857
        %v1863 = vpack.c.b16 %v1860, %v1859
        %v1864 = vpack.c.b16 %v1861, %v1861
        %1865 = vrot.lane.b32.xlu0 %v1862, 112
        %v1866 = vpop.permute.xlu0 %1865
        %1867 = vrot.lane.b32.xlu0 %v1863, 112
        %v1868 = vpop.permute.xlu0 %1867
        %1869 = vrot.lane.b32.xlu0 %v1864, 112
        %v1870 = vpop.permute.xlu0 %1869
        %vm1871 = vcmask 130048
        %v1874 = vsel %vm1871, %v1589, %v1606
        %v1877 = vsel %vm1871, %v1590, %v1608
        %v1880 = vsel %vm1871, %v1591, %v1610
        %vm1881 = vcmask 261120
        %v1883 = vsel %vm1881, %v1874, %v1625
        %v1885 = vsel %vm1881, %v1877, %v1627
        %v1887 = vsel %vm1881, %v1880, %v1629
        %vm1888 = vcmask 392192
        %v1890 = vsel %vm1888, %v1883, %v1644
        %v1892 = vsel %vm1888, %v1885, %v1646
        %v1894 = vsel %vm1888, %v1887, %v1648
        %vm1895 = vcmask 523264
        %v1897 = vsel %vm1895, %v1890, %v1663
        %v1899 = vsel %vm1895, %v1892, %v1665
        %v1901 = vsel %vm1895, %v1894, %v1667
        %vm1902 = vcmask 654336
        %v1904 = vsel %vm1902, %v1897, %v1682
        %v1906 = vsel %vm1902, %v1899, %v1684
        %v1908 = vsel %vm1902, %v1901, %v1686
        %vm1909 = vcmask 785408
        %v1911 = vsel %vm1909, %v1904, %v1701
        %v1913 = vsel %vm1909, %v1906, %v1703
        %v1915 = vsel %vm1909, %v1908, %v1705
        %vm1916 = vcmask 916480
        %v1918 = vsel %vm1916, %v1911, %v1720
        %v1921 = vsel %vm1916, %v1913, %v1722
        %v1924 = vsel %vm1916, %v1915, %v1724
        %v1927 = vsel %vm1871, %v1735, %v1752
        %v1930 = vsel %vm1871, %v1736, %v1754
        %v1933 = vsel %vm1871, %v1737, %v1756
        %v1935 = vsel %vm1881, %v1927, %v1771
        %v1937 = vsel %vm1881, %v1930, %v1773
        %v1939 = vsel %vm1881, %v1933, %v1775
        %v1941 = vsel %vm1888, %v1935, %v1790
        %v1943 = vsel %vm1888, %v1937, %v1792
        %v1945 = vsel %vm1888, %v1939, %v1794
        %v1947 = vsel %vm1895, %v1941, %v1809
        %v1949 = vsel %vm1895, %v1943, %v1811
        %v1951 = vsel %vm1895, %v1945, %v1813
        %v1953 = vsel %vm1902, %v1947, %v1828
        %v1955 = vsel %vm1902, %v1949, %v1830
        %v1957 = vsel %vm1902, %v1951, %v1832
        %v1959 = vsel %vm1909, %v1953, %v1847
        %v1961 = vsel %vm1909, %v1955, %v1849
        %v1963 = vsel %vm1909, %v1957, %v1851
        %v1965 = vsel %vm1916, %v1959, %v1866
        %v1968 = vsel %vm1916, %v1961, %v1868
        %v1971 = vsel %vm1916, %v1963, %v1870
        %v1972 = vld [vmem:[%s1] sm:$0xf]
        %v1973 = vld [vmem:[%s2] sm:$0xff]
        %1975 = vset.pattern.permute.xlu0 0
        %1976 = vperm.xlu0 %1975, %v1973
        %v1977 = vpop.permute.xlu0 %1976
        %vm1979 = vcmask 293888
        %v1981 = vsel %vm1979, %v1972, 0
        %vm1983 = vcmask 1041408
        %v1984 = vsel %vm1983, %v1924, 0
        %v1986 = vsel %vm1983, %v1971, 0
        %1988 = vmatprep.subr.bf16.mxu0 %v1965
        %1989 = vmatpush1.bf16.msra.mxu0 %v1918
        %1990 = vmatprep.subr.bf16.mxu0 %v1968
        %1991 = vmatpush1.bf16.msra.mxu0 %v1921
        %1992 = vmatprep.subr.bf16.mxu0 %v1986
        %1993 = vmatpush1.bf16.msra.mxu0 %v1984
        %1994 = vmatprep.subr.bf16.mxu0 0
        %1995 = vmatpush1.bf16.msra.mxu0 0
        %1996 = vmatprep.subr.bf16.mxu0 0
        %1997 = vmatpush1.bf16.msra.mxu0 0
        %1998 = vmatprep.subr.bf16.mxu0 0
        %1999 = vmatpush1.bf16.msra.mxu0 0
        %2000 = vmatprep.subr.bf16.mxu0 0
        %2001 = vmatpush1.bf16.msra.mxu0 0
        %2002 = vmatprep.subr.bf16.mxu0 0
        %2003 = vmatpush1.bf16.msra.mxu0 0
        %2004 = vmatprep.subr.bf16.mxu0 0
        %2005 = vmatpush1.bf16.msra.mxu0 0
        %2006 = vmatprep.subr.bf16.mxu0 0
        %2007 = vmatpush1.bf16.msra.mxu0 0
        %2008 = vmatprep.subr.bf16.mxu0 0
        %2009 = vmatpush1.bf16.msra.mxu0 0
        %2010 = vmatprep.subr.bf16.mxu0 0
        %2011 = vmatpush1.bf16.msra.mxu0 0
        %2012 = vmatprep.subr.bf16.mxu0 0
        %2013 = vmatpush1.bf16.msra.mxu0 0
        %2014 = vmatprep.subr.bf16.mxu0 0
        %2015 = vmatpush1.bf16.msra.mxu0 0
        %2016 = vmatprep.subr.bf16.mxu0 0
        %2017 = vmatpush1.bf16.msra.mxu0 0
        %2018 = vmatprep.subr.bf16.mxu0 0
        %2019 = vmatpush1.bf16.msra.mxu0 0
        %2020 = vmatprep.mubr.bf16.mxu0 0
        %2021 = vmatmul.mubr.bf16.gmra.mrb[0].mxu0 %v1981
        %v2022 = vpop.f32.mrb[0].mxu0
        %v2023 = vadd.f32 %v1977, %v2022
        %v2024 = vpop.f32.mrb[0].mxu0
        %v2025 = vadd.f32 %v1977, %v2024
        %v2026 = vpop.f32.mrb[0].mxu0
        %v2027 = vpop.f32.mrb[0].mxu0
        %2028 = vdwg.mxu0
        %2029 = vst [vmem:[%s188] sm:$0xff] %v2023
        %2030 = vst [vmem:[%s188 + $0x8] sm:$0xff] %v2025
        %s2031 = sand.u32 %s96, 1
        %s2032 = scalar_lea.sflag [#allocation5], %s2031
        %s2033 = sand.u32 %s96, 1
        %s2034 = smul.addr %s2033, 16
        %s2035 = scalar_lea.vmem [#allocation6], %s2034
        // Predicated region
        $region37: #{tpu_custom_call.1} parent=31 // pred_check
          %p2036 = pneg %p106
        $region38: #{tpu_custom_call.1} parent=31 // pred_check_branch
          %2038 = sbr.rel (%p2036) target = $region40
        $region39: #{tpu_custom_call.1} parent=31 // pred_region
          %s2040 = ssub.s32 256, 256
          %2041 = vsyncadd %s2032, %s2040
          %s2042 = smul.addr %s20, 2
          %s2043 = smul.addr %s2042, 128
          %s2044 = scalar_lea.hbm %s3, %s2043
          %s2046 = sshll.u32 %s2035, 4
          %s2047 = int_to_ptr.vmem [resolvable:$true] %s2046
          %2049 = dma.vmem_to_hbm [thread:$0]  %s2047, 256, %s2044, %s2032
        $region40: #{tpu_custom_call.1} parent=31 // pred_fallthru
          _
      $region32: #{tpu_custom_call.1} parent=5 // pred_fallthru
        _
      %p2050 = scmp.le.s32.totalorder 2, %s15
      // Predicated region
      $region41: #{tpu_custom_call.1} parent=5 // pred_check
        %p2051 = pneg %p2050
      $region42: #{tpu_custom_call.1} parent=5 // pred_check_branch
        %2053 = sbr.rel (%p2051) target = $region44
      $region43: #{tpu_custom_call.1} parent=5 // pred_region
        %s2054 = ssub.s32 %s15, 2
        // Predicated region
        $region45: #{tpu_custom_call.1} parent=43 // pred_check
          %p2055 = pneg %p112
        $region46: #{tpu_custom_call.1} parent=43 // pred_check_branch
          %2057 = sbr.rel (%p2055) target = $region48
        $region47: #{tpu_custom_call.1} parent=43 // pred_region
          %s2058 = sand.u32 %s97, 1
          %s2059 = scalar_lea.sflag [#allocation5], %s2058
          %s2060 = sand.u32 %s97, 1
          %s2061 = smul.addr %s2060, 16
          %s2062 = scalar_lea.vmem [#allocation6], %s2061
          %2063 = dma.done %s2059, 256
        $region48: #{tpu_custom_call.1} parent=43 // pred_fallthru
          _
      $region44: #{tpu_custom_call.1} parent=5 // pred_fallthru
        _
    $region6: #{tpu_custom_call.1} parent=1 // loop_footer
      %s19 = sadd.s32 1, %s15
    $region7: #{tpu_custom_call.1} parent=1 // loop_footer_branch
      %14 = sbr.rel target = $region3
    $region8: #{tpu_custom_call.1} parent=1 // loop_exit
      _
    %2064 = vsyncpa [#allocation4], 1
    %s2065 = scalar_lea.sflag [#allocation4], 1
    %2066 = vsyncpa %s2065, 1
    %2067 = vsyncpa [#allocation5], 1
    %s2068 = scalar_lea.sflag [#allocation5], 1
    %2069 = vsyncpa %s2068, 1

</llo_original>
